<compile_context>
chip_gen: v7x
topology: tpu7x:2x2x1
jax: 0.10.0
libtpu: 0.0.40
codegen_flags: <defaults>
</compile_context>

<pallas_src>
import functools

import jax
import jax.numpy as jnp
from jax.experimental import pallas as pl
from jax.experimental.pallas import tpu as pltpu

LN_EPS = 1e-5           # PyTorch nn.LayerNorm default eps
LANE = 128              # TPU lane width
DEFAULT_TILE_B = 2048   # batch rows per grid step (multiple of 8)


def _round_up(n, m):
    return ((n + m - 1) // m) * m


def _use_bf16_eltwise():
    """bf16 element-wise math only on chips with a bf16 VALU/EUP (v6e, v7x)."""
    try:
        kind = jax.devices()[0].device_kind.lower()
    except Exception:
        return True
    return not any(tag in kind for tag in ("v2", "v3", "v4", "v5"))


def _ln_relu(x, gamma, beta, *, bf16_eltwise):
    """LayerNorm (single-pass f32 stats) fused with ReLU; returns bf16.

    E[x], E[x^2] and rsqrt are computed in f32.  On v6e/v7x the normalize /
    affine / ReLU runs in bf16 (2x VALU throughput) and directly yields the
    bf16 operand for the next MXU matmul; on v5e it stays f32 with a single
    trailing cast.  Padded (all-zero) batch rows give var=0 -> rsqrt(eps),
    which is finite and sliced off by the wrapper.
    """
    mean = jnp.mean(x, axis=-1, keepdims=True)
    msq = jnp.mean(x * x, axis=-1, keepdims=True)
    var = jnp.maximum(msq - mean * mean, 0.0)
    scale = jax.lax.rsqrt(var + LN_EPS)
    if bf16_eltwise:
        y = (x.astype(jnp.bfloat16) - mean.astype(jnp.bfloat16)) \
            * scale.astype(jnp.bfloat16) * gamma.astype(jnp.bfloat16) \
            + beta.astype(jnp.bfloat16)
        return jnp.maximum(y, 0.0)                      # bf16 -> next MXU operand
    y = (x - mean) * scale * gamma + beta               # f32 VALU path (v5e)
    return jnp.maximum(y, 0.0).astype(jnp.bfloat16)


def dqn_kernel(x_ref,
               w1_ref, b1_ref, g1_ref, be1_ref,
               w2_ref, b2_ref, g2_ref, be2_ref,
               w3_ref, b3_ref, g3_ref, be3_ref,
               w4_ref, b4_ref,
               out_ref, *, bf16_eltwise):
    ln_relu = functools.partial(_ln_relu, bf16_eltwise=bf16_eltwise)

    # Block 1: Linear(input_dim, 512) -> LayerNorm -> ReLU -> Dropout(identity)
    x = x_ref[...].astype(jnp.bfloat16)
    h = jnp.dot(x, w1_ref[...], preferred_element_type=jnp.float32) + b1_ref[...]
    h = ln_relu(h, g1_ref[...], be1_ref[...])

    # Block 2: Linear(512, 256) -> LayerNorm -> ReLU -> Dropout(identity)
    h = jnp.dot(h, w2_ref[...], preferred_element_type=jnp.float32) + b2_ref[...]
    h = ln_relu(h, g2_ref[...], be2_ref[...])

    # Block 3: Linear(256, 128) -> LayerNorm -> ReLU
    h = jnp.dot(h, w3_ref[...], preferred_element_type=jnp.float32) + b3_ref[...]
    h = ln_relu(h, g3_ref[...], be3_ref[...])

    # Head: Linear(128, out_pad) -- columns padded to 128 (lane-dense bf16 store)
    out = jnp.dot(h, w4_ref[...], preferred_element_type=jnp.float32) + b4_ref[...]
    out_ref[...] = out.astype(out_ref.dtype)


def dqn_forward(x, params, *, tile_b=DEFAULT_TILE_B):
    """Fused DQN MLP forward.  x: (batch, input_dim) f32 -> (batch, output_dim) f32."""
    batch, input_dim = x.shape
    out_dim = params["out_dim"]
    out_pad = params["w4"].shape[1]

    # --- batch tiling --------------------------------------------------------
    # Balance the tile to the batch so padding never adds a fully wasted tile,
    # and keep >= 2 grid steps once batch >= 16 so the "parallel" batch axis
    # can actually split across both TensorCores on megacore parts (v7x).
    n_tiles = pl.cdiv(batch, tile_b)
    if batch >= 16:
        n_tiles = max(n_tiles, 2)
    tb = _round_up(pl.cdiv(batch, n_tiles), 8)
    padded_batch = tb * n_tiles
    if padded_batch != batch:
        x = jnp.pad(x, ((0, padded_batch - batch), (0, 0)))
    grid = (n_tiles,)

    weight_args = (
        params["w1"], params["b1"], params["g1"], params["be1"],
        params["w2"], params["b2"], params["g2"], params["be2"],
        params["w3"], params["b3"], params["g3"], params["be3"],
        params["w4"], params["b4"],
    )

    def resident(arr):
        # Constant block index + single buffer: parameter stays VMEM-resident
        # across grid steps without a pointless second pipeline buffer.
        return pl.BlockSpec(arr.shape, lambda i: (0,) * arr.ndim,
                            pipeline_mode=pl.Buffered(1))

    in_specs = [pl.BlockSpec((tb, input_dim), lambda i: (i, 0))]
    in_specs += [resident(a) for a in weight_args]
    out_specs = pl.BlockSpec((tb, out_pad), lambda i: (i, 0))

    kernel = functools.partial(dqn_kernel, bf16_eltwise=_use_bf16_eltwise())

    out = pl.pallas_call(
        kernel,
        out_shape=jax.ShapeDtypeStruct((padded_batch, out_pad), jnp.bfloat16),
        grid=grid,
        in_specs=in_specs,
        out_specs=out_specs,
        compiler_params=pltpu.CompilerParams(
            dimension_semantics=("parallel",),
            vmem_limit_bytes=32 << 20,
        ),
    )(x, *weight_args)

    # Slice the real rows/columns back out; return f32 Q-values.
    return out[:batch, :out_dim].astype(jnp.float32)


def init_params(key, input_dim, output_dim):
    """Deterministic parameter init mirroring the PyTorch module's __init__.

    Weights are stored (in, out) in bf16 (MXU path); biases / LayerNorm affine
    params stay f32.  The head is zero-padded to a 128-wide lane-dense slab.
    """
    dims = [(input_dim, 512), (512, 256), (256, 128), (128, output_dim)]
    keys = jax.random.split(key, 2 * len(dims))
    params = {"out_dim": output_dim}
    out_pad = _round_up(output_dim, LANE)

    def kaiming_normal(k, fan_in, fan_out):
        # kaiming_normal_(mode='fan_in', nonlinearity='relu'): std = sqrt(2/fan_in)
        std = (2.0 / fan_in) ** 0.5
        return jax.random.normal(k, (fan_in, fan_out), jnp.float32) * std

    def default_bias(k, fan_in, n):
        # PyTorch nn.Linear default bias init: U(-1/sqrt(fan_in), 1/sqrt(fan_in))
        bound = 1.0 / (fan_in ** 0.5)
        return jax.random.uniform(k, (1, n), jnp.float32, -bound, bound)

    for i, (fi, fo) in enumerate(dims, start=1):
        w = kaiming_normal(keys[2 * (i - 1)], fi, fo)
        b = default_bias(keys[2 * (i - 1) + 1], fi, fo)
        if i == 4 and fo != out_pad:  # pad head to lane-dense width with zeros
            w = jnp.pad(w, ((0, 0), (0, out_pad - fo)))
            b = jnp.pad(b, ((0, 0), (0, out_pad - fo)))
        params[f"w{i}"] = w.astype(jnp.bfloat16)
        params[f"b{i}"] = b  # f32

    # LayerNorm affine params: gamma=1, beta=0 (PyTorch defaults).
    for i, (_, fo) in enumerate(dims[:3], start=1):
        params[f"g{i}"] = jnp.ones((1, fo), jnp.float32)
        params[f"be{i}"] = jnp.zeros((1, fo), jnp.float32)

    return params


def _reference_forward(x, params):
    """Pure-JAX f32 reference mirroring the PyTorch module (Dropout = identity)."""
    h = x
    for i in range(1, 4):
        h = h @ params[f"w{i}"].astype(jnp.float32) + params[f"b{i}"]
        mean = jnp.mean(h, axis=-1, keepdims=True)
        var = jnp.mean((h - mean) ** 2, axis=-1, keepdims=True)
        h = (h - mean) * jax.lax.rsqrt(var + LN_EPS) * params[f"g{i}"] + params[f"be{i}"]
        h = jnp.maximum(h, 0.0)
    out = h @ params["w4"].astype(jnp.float32) + params["b4"]
    return out[:, :params["out_dim"]]


if __name__ == "__main__":
    key = jax.random.PRNGKey(0)
    k_param, k_x = jax.random.split(key)

    input_dim, output_dim, batch = 32, 4, 2
    params = init_params(k_param, input_dim, output_dim)
    x = jax.random.normal(k_x, (batch, input_dim), jnp.float32)

    out = dqn_forward(x, params)
    out = jax.block_until_ready(out)

    ref = _reference_forward(x, params)
    assert out.shape == (batch, output_dim)
    # bf16 matmuls (f32 accumulation) + bf16 LN/ReLU element-wise math + bf16
    # output store -> tolerance relaxed vs a pure-f32 reference.
    assert jnp.allclose(out, ref, atol=1e-1, rtol=5e-2), "mismatch vs JAX reference"

    print("KERNEL_OK")
</pallas_src>

<mosaic_0001>
module attributes {stable_mosaic.version = 11 : i64} {
  func.func @dqn_kernel(%arg0: i32, %arg1: memref<8x32xf32, #tpu.memory_space<vmem>>, %arg2: memref<32x512xbf16, #tpu.memory_space<vmem>>, %arg3: memref<1x512xf32, #tpu.memory_space<vmem>>, %arg4: memref<1x512xf32, #tpu.memory_space<vmem>>, %arg5: memref<1x512xf32, #tpu.memory_space<vmem>>, %arg6: memref<512x256xbf16, #tpu.memory_space<vmem>>, %arg7: memref<1x256xf32, #tpu.memory_space<vmem>>, %arg8: memref<1x256xf32, #tpu.memory_space<vmem>>, %arg9: memref<1x256xf32, #tpu.memory_space<vmem>>, %arg10: memref<256x128xbf16, #tpu.memory_space<vmem>>, %arg11: memref<1x128xf32, #tpu.memory_space<vmem>>, %arg12: memref<1x128xf32, #tpu.memory_space<vmem>>, %arg13: memref<1x128xf32, #tpu.memory_space<vmem>>, %arg14: memref<128x128xbf16, #tpu.memory_space<vmem>>, %arg15: memref<1x128xf32, #tpu.memory_space<vmem>>, %arg16: memref<8x128xbf16, #tpu.memory_space<vmem>>) attributes {dimension_semantics = [#tpu.dimension_semantics<parallel>], iteration_bounds = array<i64: 1>, scalar_prefetch = 0 : i64, scratch_operands = 0 : i64, tpu.core_type = #tpu.core_type<tc>, window_params = [{transform_indices = @transform_0, window_bounds = array<i64: 8, 32>}, {pipeline_mode = #tpu.pipeline_mode<synchronous>, transform_indices = @transform_1, window_bounds = array<i64: 32, 512>}, {pipeline_mode = #tpu.pipeline_mode<synchronous>, transform_indices = @transform_2, window_bounds = array<i64: 1, 512>}, {pipeline_mode = #tpu.pipeline_mode<synchronous>, transform_indices = @transform_3, window_bounds = array<i64: 1, 512>}, {pipeline_mode = #tpu.pipeline_mode<synchronous>, transform_indices = @transform_4, window_bounds = array<i64: 1, 512>}, {pipeline_mode = #tpu.pipeline_mode<synchronous>, transform_indices = @transform_5, window_bounds = array<i64: 512, 256>}, {pipeline_mode = #tpu.pipeline_mode<synchronous>, transform_indices = @transform_6, window_bounds = array<i64: 1, 256>}, {pipeline_mode = #tpu.pipeline_mode<synchronous>, transform_indices = @transform_7, window_bounds = array<i64: 1, 256>}, {pipeline_mode = #tpu.pipeline_mode<synchronous>, transform_indices = @transform_8, window_bounds = array<i64: 1, 256>}, {pipeline_mode = #tpu.pipeline_mode<synchronous>, transform_indices = @transform_9, window_bounds = array<i64: 256, 128>}, {pipeline_mode = #tpu.pipeline_mode<synchronous>, transform_indices = @transform_10, window_bounds = array<i64: 1, 128>}, {pipeline_mode = #tpu.pipeline_mode<synchronous>, transform_indices = @transform_11, window_bounds = array<i64: 1, 128>}, {pipeline_mode = #tpu.pipeline_mode<synchronous>, transform_indices = @transform_12, window_bounds = array<i64: 1, 128>}, {pipeline_mode = #tpu.pipeline_mode<synchronous>, transform_indices = @transform_13, window_bounds = array<i64: 128, 128>}, {pipeline_mode = #tpu.pipeline_mode<synchronous>, transform_indices = @transform_14, window_bounds = array<i64: 1, 128>}, {transform_indices = @transform_15, window_bounds = array<i64: 8, 128>}]} {
    %c0 = arith.constant 0 : index
    %c0_0 = arith.constant 0 : index
    %0 = vector.load %arg1[%c0, %c0_0] : memref<8x32xf32, #tpu.memory_space<vmem>>, vector<8x32xf32>
    %1 = arith.truncf %0 : vector<8x32xf32> to vector<8x32xbf16>
    %c0_1 = arith.constant 0 : index
    %c0_2 = arith.constant 0 : index
    %2 = vector.load %arg2[%c0_1, %c0_2] : memref<32x512xbf16, #tpu.memory_space<vmem>>, vector<32x512xbf16>
    %cst = arith.constant dense<0.000000e+00> : vector<8x512xf32>
    %3 = tpu.matmul %1, %2, %cst {dimension_numbers = #tpu.dot_dimension_numbers<[1], [0], [0], [1], [0, 0, 1, 1], [], []>} : vector<8x32xbf16>, vector<32x512xbf16>, vector<8x512xf32> -> vector<8x512xf32>
    %c0_3 = arith.constant 0 : index
    %c0_4 = arith.constant 0 : index
    %4 = vector.load %arg3[%c0_3, %c0_4] : memref<1x512xf32, #tpu.memory_space<vmem>>, vector<1x512xf32>
    %5 = vector.broadcast %4 : vector<1x512xf32> to vector<8x512xf32>
    %6 = arith.addf %3, %5 : vector<8x512xf32>
    %c0_5 = arith.constant 0 : index
    %c0_6 = arith.constant 0 : index
    %7 = vector.load %arg4[%c0_5, %c0_6] : memref<1x512xf32, #tpu.memory_space<vmem>>, vector<1x512xf32>
    %c0_7 = arith.constant 0 : index
    %c0_8 = arith.constant 0 : index
    %8 = vector.load %arg5[%c0_7, %c0_8] : memref<1x512xf32, #tpu.memory_space<vmem>>, vector<1x512xf32>
    %cst_9 = arith.constant dense<0.000000e+00> : vector<8xf32>
    %9 = vector.multi_reduction <add>, %6, %cst_9 [1] : vector<8x512xf32> to vector<8xf32>
    %10 = vector.shape_cast %9 : vector<8xf32> to vector<8x1xf32>
    %cst_10 = arith.constant 5.120000e+02 : f32
    %11 = vector.broadcast %cst_10 : f32 to vector<8x1xf32>
    %12 = arith.divf %10, %11 : vector<8x1xf32>
    %13 = arith.mulf %6, %6 : vector<8x512xf32>
    %cst_11 = arith.constant dense<0.000000e+00> : vector<8xf32>
    %14 = vector.multi_reduction <add>, %13, %cst_11 [1] : vector<8x512xf32> to vector<8xf32>
    %15 = vector.shape_cast %14 : vector<8xf32> to vector<8x1xf32>
    %cst_12 = arith.constant 5.120000e+02 : f32
    %16 = vector.broadcast %cst_12 : f32 to vector<8x1xf32>
    %17 = arith.divf %15, %16 : vector<8x1xf32>
    %18 = arith.mulf %12, %12 : vector<8x1xf32>
    %19 = arith.subf %17, %18 : vector<8x1xf32>
    %cst_13 = arith.constant 0.000000e+00 : f32
    %20 = vector.broadcast %cst_13 : f32 to vector<8x1xf32>
    %21 = arith.maximumf %19, %20 : vector<8x1xf32>
    %cst_14 = arith.constant 9.99999974E-6 : f32
    %22 = vector.broadcast %cst_14 : f32 to vector<8x1xf32>
    %23 = arith.addf %21, %22 : vector<8x1xf32>
    %24 = math.rsqrt %23 : vector<8x1xf32>
    %25 = arith.truncf %6 : vector<8x512xf32> to vector<8x512xbf16>
    %26 = arith.truncf %12 : vector<8x1xf32> to vector<8x1xbf16>
    %27 = vector.broadcast %26 : vector<8x1xbf16> to vector<8x512xbf16>
    %28 = arith.subf %25, %27 : vector<8x512xbf16>
    %29 = arith.truncf %24 : vector<8x1xf32> to vector<8x1xbf16>
    %30 = vector.broadcast %29 : vector<8x1xbf16> to vector<8x512xbf16>
    %31 = arith.mulf %28, %30 : vector<8x512xbf16>
    %32 = arith.truncf %7 : vector<1x512xf32> to vector<1x512xbf16>
    %33 = vector.broadcast %32 : vector<1x512xbf16> to vector<8x512xbf16>
    %34 = arith.mulf %31, %33 : vector<8x512xbf16>
    %35 = arith.truncf %8 : vector<1x512xf32> to vector<1x512xbf16>
    %36 = vector.broadcast %35 : vector<1x512xbf16> to vector<8x512xbf16>
    %37 = arith.addf %34, %36 : vector<8x512xbf16>
    %cst_15 = arith.constant 0.000000e+00 : bf16
    %38 = vector.broadcast %cst_15 : bf16 to vector<8x512xbf16>
    %39 = arith.maximumf %37, %38 : vector<8x512xbf16>
    %c0_16 = arith.constant 0 : index
    %c0_17 = arith.constant 0 : index
    %40 = vector.load %arg6[%c0_16, %c0_17] : memref<512x256xbf16, #tpu.memory_space<vmem>>, vector<512x256xbf16>
    %cst_18 = arith.constant dense<0.000000e+00> : vector<8x256xf32>
    %41 = tpu.matmul %39, %40, %cst_18 {dimension_numbers = #tpu.dot_dimension_numbers<[1], [0], [0], [1], [0, 0, 1, 1], [], []>} : vector<8x512xbf16>, vector<512x256xbf16>, vector<8x256xf32> -> vector<8x256xf32>
    %c0_19 = arith.constant 0 : index
    %c0_20 = arith.constant 0 : index
    %42 = vector.load %arg7[%c0_19, %c0_20] : memref<1x256xf32, #tpu.memory_space<vmem>>, vector<1x256xf32>
    %43 = vector.broadcast %42 : vector<1x256xf32> to vector<8x256xf32>
    %44 = arith.addf %41, %43 : vector<8x256xf32>
    %c0_21 = arith.constant 0 : index
    %c0_22 = arith.constant 0 : index
    %45 = vector.load %arg8[%c0_21, %c0_22] : memref<1x256xf32, #tpu.memory_space<vmem>>, vector<1x256xf32>
    %c0_23 = arith.constant 0 : index
    %c0_24 = arith.constant 0 : index
    %46 = vector.load %arg9[%c0_23, %c0_24] : memref<1x256xf32, #tpu.memory_space<vmem>>, vector<1x256xf32>
    %cst_25 = arith.constant dense<0.000000e+00> : vector<8xf32>
    %47 = vector.multi_reduction <add>, %44, %cst_25 [1] : vector<8x256xf32> to vector<8xf32>
    %48 = vector.shape_cast %47 : vector<8xf32> to vector<8x1xf32>
    %cst_26 = arith.constant 2.560000e+02 : f32
    %49 = vector.broadcast %cst_26 : f32 to vector<8x1xf32>
    %50 = arith.divf %48, %49 : vector<8x1xf32>
    %51 = arith.mulf %44, %44 : vector<8x256xf32>
    %cst_27 = arith.constant dense<0.000000e+00> : vector<8xf32>
    %52 = vector.multi_reduction <add>, %51, %cst_27 [1] : vector<8x256xf32> to vector<8xf32>
    %53 = vector.shape_cast %52 : vector<8xf32> to vector<8x1xf32>
    %cst_28 = arith.constant 2.560000e+02 : f32
    %54 = vector.broadcast %cst_28 : f32 to vector<8x1xf32>
    %55 = arith.divf %53, %54 : vector<8x1xf32>
    %56 = arith.mulf %50, %50 : vector<8x1xf32>
    %57 = arith.subf %55, %56 : vector<8x1xf32>
    %cst_29 = arith.constant 0.000000e+00 : f32
    %58 = vector.broadcast %cst_29 : f32 to vector<8x1xf32>
    %59 = arith.maximumf %57, %58 : vector<8x1xf32>
    %cst_30 = arith.constant 9.99999974E-6 : f32
    %60 = vector.broadcast %cst_30 : f32 to vector<8x1xf32>
    %61 = arith.addf %59, %60 : vector<8x1xf32>
    %62 = math.rsqrt %61 : vector<8x1xf32>
    %63 = arith.truncf %44 : vector<8x256xf32> to vector<8x256xbf16>
    %64 = arith.truncf %50 : vector<8x1xf32> to vector<8x1xbf16>
    %65 = vector.broadcast %64 : vector<8x1xbf16> to vector<8x256xbf16>
    %66 = arith.subf %63, %65 : vector<8x256xbf16>
    %67 = arith.truncf %62 : vector<8x1xf32> to vector<8x1xbf16>
    %68 = vector.broadcast %67 : vector<8x1xbf16> to vector<8x256xbf16>
    %69 = arith.mulf %66, %68 : vector<8x256xbf16>
    %70 = arith.truncf %45 : vector<1x256xf32> to vector<1x256xbf16>
    %71 = vector.broadcast %70 : vector<1x256xbf16> to vector<8x256xbf16>
    %72 = arith.mulf %69, %71 : vector<8x256xbf16>
    %73 = arith.truncf %46 : vector<1x256xf32> to vector<1x256xbf16>
    %74 = vector.broadcast %73 : vector<1x256xbf16> to vector<8x256xbf16>
    %75 = arith.addf %72, %74 : vector<8x256xbf16>
    %cst_31 = arith.constant 0.000000e+00 : bf16
    %76 = vector.broadcast %cst_31 : bf16 to vector<8x256xbf16>
    %77 = arith.maximumf %75, %76 : vector<8x256xbf16>
    %c0_32 = arith.constant 0 : index
    %c0_33 = arith.constant 0 : index
    %78 = vector.load %arg10[%c0_32, %c0_33] : memref<256x128xbf16, #tpu.memory_space<vmem>>, vector<256x128xbf16>
    %cst_34 = arith.constant dense<0.000000e+00> : vector<8x128xf32>
    %79 = tpu.matmul %77, %78, %cst_34 {dimension_numbers = #tpu.dot_dimension_numbers<[1], [0], [0], [1], [0, 0, 1, 1], [], []>} : vector<8x256xbf16>, vector<256x128xbf16>, vector<8x128xf32> -> vector<8x128xf32>
    %c0_35 = arith.constant 0 : index
    %c0_36 = arith.constant 0 : index
    %80 = vector.load %arg11[%c0_35, %c0_36] : memref<1x128xf32, #tpu.memory_space<vmem>>, vector<1x128xf32>
    %81 = vector.broadcast %80 : vector<1x128xf32> to vector<8x128xf32>
    %82 = arith.addf %79, %81 : vector<8x128xf32>
    %c0_37 = arith.constant 0 : index
    %c0_38 = arith.constant 0 : index
    %83 = vector.load %arg12[%c0_37, %c0_38] : memref<1x128xf32, #tpu.memory_space<vmem>>, vector<1x128xf32>
    %c0_39 = arith.constant 0 : index
    %c0_40 = arith.constant 0 : index
    %84 = vector.load %arg13[%c0_39, %c0_40] : memref<1x128xf32, #tpu.memory_space<vmem>>, vector<1x128xf32>
    %cst_41 = arith.constant dense<0.000000e+00> : vector<8xf32>
    %85 = vector.multi_reduction <add>, %82, %cst_41 [1] : vector<8x128xf32> to vector<8xf32>
    %86 = vector.shape_cast %85 : vector<8xf32> to vector<8x1xf32>
    %cst_42 = arith.constant 1.280000e+02 : f32
    %87 = vector.broadcast %cst_42 : f32 to vector<8x1xf32>
    %88 = arith.divf %86, %87 : vector<8x1xf32>
    %89 = arith.mulf %82, %82 : vector<8x128xf32>
    %cst_43 = arith.constant dense<0.000000e+00> : vector<8xf32>
    %90 = vector.multi_reduction <add>, %89, %cst_43 [1] : vector<8x128xf32> to vector<8xf32>
    %91 = vector.shape_cast %90 : vector<8xf32> to vector<8x1xf32>
    %cst_44 = arith.constant 1.280000e+02 : f32
    %92 = vector.broadcast %cst_44 : f32 to vector<8x1xf32>
    %93 = arith.divf %91, %92 : vector<8x1xf32>
    %94 = arith.mulf %88, %88 : vector<8x1xf32>
    %95 = arith.subf %93, %94 : vector<8x1xf32>
    %cst_45 = arith.constant 0.000000e+00 : f32
    %96 = vector.broadcast %cst_45 : f32 to vector<8x1xf32>
    %97 = arith.maximumf %95, %96 : vector<8x1xf32>
    %cst_46 = arith.constant 9.99999974E-6 : f32
    %98 = vector.broadcast %cst_46 : f32 to vector<8x1xf32>
    %99 = arith.addf %97, %98 : vector<8x1xf32>
    %100 = math.rsqrt %99 : vector<8x1xf32>
    %101 = arith.truncf %82 : vector<8x128xf32> to vector<8x128xbf16>
    %102 = arith.truncf %88 : vector<8x1xf32> to vector<8x1xbf16>
    %103 = vector.broadcast %102 : vector<8x1xbf16> to vector<8x128xbf16>
    %104 = arith.subf %101, %103 : vector<8x128xbf16>
    %105 = arith.truncf %100 : vector<8x1xf32> to vector<8x1xbf16>
    %106 = vector.broadcast %105 : vector<8x1xbf16> to vector<8x128xbf16>
    %107 = arith.mulf %104, %106 : vector<8x128xbf16>
    %108 = arith.truncf %83 : vector<1x128xf32> to vector<1x128xbf16>
    %109 = vector.broadcast %108 : vector<1x128xbf16> to vector<8x128xbf16>
    %110 = arith.mulf %107, %109 : vector<8x128xbf16>
    %111 = arith.truncf %84 : vector<1x128xf32> to vector<1x128xbf16>
    %112 = vector.broadcast %111 : vector<1x128xbf16> to vector<8x128xbf16>
    %113 = arith.addf %110, %112 : vector<8x128xbf16>
    %cst_47 = arith.constant 0.000000e+00 : bf16
    %114 = vector.broadcast %cst_47 : bf16 to vector<8x128xbf16>
    %115 = arith.maximumf %113, %114 : vector<8x128xbf16>
    %c0_48 = arith.constant 0 : index
    %c0_49 = arith.constant 0 : index
    %116 = vector.load %arg14[%c0_48, %c0_49] : memref<128x128xbf16, #tpu.memory_space<vmem>>, vector<128x128xbf16>
    %cst_50 = arith.constant dense<0.000000e+00> : vector<8x128xf32>
    %117 = tpu.matmul %115, %116, %cst_50 {dimension_numbers = #tpu.dot_dimension_numbers<[1], [0], [0], [1], [0, 0, 1, 1], [], []>} : vector<8x128xbf16>, vector<128x128xbf16>, vector<8x128xf32> -> vector<8x128xf32>
    %c0_51 = arith.constant 0 : index
    %c0_52 = arith.constant 0 : index
    %118 = vector.load %arg15[%c0_51, %c0_52] : memref<1x128xf32, #tpu.memory_space<vmem>>, vector<1x128xf32>
    %119 = vector.broadcast %118 : vector<1x128xf32> to vector<8x128xf32>
    %120 = arith.addf %117, %119 : vector<8x128xf32>
    %121 = arith.truncf %120 : vector<8x128xf32> to vector<8x128xbf16>
    %c0_53 = arith.constant 0 : index
    %c0_54 = arith.constant 0 : index
    %122 = vector.load %arg16[%c0_53, %c0_54] : memref<8x128xbf16, #tpu.memory_space<vmem>>, vector<8x128xbf16>
    tpu.vector_store %arg16[%c0_53, %c0_54], %121 {strides = array<i32>} : memref<8x128xbf16, #tpu.memory_space<vmem>>, vector<8x128xbf16>,
    return
  }
  func.func @transform_0(%arg0: i32) -> (i32, i32) {
    %c0_i32 = arith.constant 0 : i32
    %c0_i32_0 = arith.constant 0 : i32
    return %arg0, %c0_i32 : i32, i32
  }
  func.func @transform_1(%arg0: i32) -> (i32, i32) {
    %c0_i32 = arith.constant 0 : i32
    %c0_i32_0 = arith.constant 0 : i32
    %c0_i32_1 = arith.constant 0 : i32
    return %c0_i32, %c0_i32_0 : i32, i32
  }
  func.func @transform_2(%arg0: i32) -> (i32, i32) {
    %c0_i32 = arith.constant 0 : i32
    %c0_i32_0 = arith.constant 0 : i32
    %c0_i32_1 = arith.constant 0 : i32
    return %c0_i32, %c0_i32_0 : i32, i32
  }
  func.func @transform_3(%arg0: i32) -> (i32, i32) {
    %c0_i32 = arith.constant 0 : i32
    %c0_i32_0 = arith.constant 0 : i32
    %c0_i32_1 = arith.constant 0 : i32
    return %c0_i32, %c0_i32_0 : i32, i32
  }
  func.func @transform_4(%arg0: i32) -> (i32, i32) {
    %c0_i32 = arith.constant 0 : i32
    %c0_i32_0 = arith.constant 0 : i32
    %c0_i32_1 = arith.constant 0 : i32
    return %c0_i32, %c0_i32_0 : i32, i32
  }
  func.func @transform_5(%arg0: i32) -> (i32, i32) {
    %c0_i32 = arith.constant 0 : i32
    %c0_i32_0 = arith.constant 0 : i32
    %c0_i32_1 = arith.constant 0 : i32
    return %c0_i32, %c0_i32_0 : i32, i32
  }
  func.func @transform_6(%arg0: i32) -> (i32, i32) {
    %c0_i32 = arith.constant 0 : i32
    %c0_i32_0 = arith.constant 0 : i32
    %c0_i32_1 = arith.constant 0 : i32
    return %c0_i32, %c0_i32_0 : i32, i32
  }
  func.func @transform_7(%arg0: i32) -> (i32, i32) {
    %c0_i32 = arith.constant 0 : i32
    %c0_i32_0 = arith.constant 0 : i32
    %c0_i32_1 = arith.constant 0 : i32
    return %c0_i32, %c0_i32_0 : i32, i32
  }
  func.func @transform_8(%arg0: i32) -> (i32, i32) {
    %c0_i32 = arith.constant 0 : i32
    %c0_i32_0 = arith.constant 0 : i32
    %c0_i32_1 = arith.constant 0 : i32
    return %c0_i32, %c0_i32_0 : i32, i32
  }
  func.func @transform_9(%arg0: i32) -> (i32, i32) {
    %c0_i32 = arith.constant 0 : i32
    %c0_i32_0 = arith.constant 0 : i32
    %c0_i32_1 = arith.constant 0 : i32
    return %c0_i32, %c0_i32_0 : i32, i32
  }
  func.func @transform_10(%arg0: i32) -> (i32, i32) {
    %c0_i32 = arith.constant 0 : i32
    %c0_i32_0 = arith.constant 0 : i32
    %c0_i32_1 = arith.constant 0 : i32
    return %c0_i32, %c0_i32_0 : i32, i32
  }
  func.func @transform_11(%arg0: i32) -> (i32, i32) {
    %c0_i32 = arith.constant 0 : i32
    %c0_i32_0 = arith.constant 0 : i32
    %c0_i32_1 = arith.constant 0 : i32
    return %c0_i32, %c0_i32_0 : i32, i32
  }
  func.func @transform_12(%arg0: i32) -> (i32, i32) {
    %c0_i32 = arith.constant 0 : i32
    %c0_i32_0 = arith.constant 0 : i32
    %c0_i32_1 = arith.constant 0 : i32
    return %c0_i32, %c0_i32_0 : i32, i32
  }
  func.func @transform_13(%arg0: i32) -> (i32, i32) {
    %c0_i32 = arith.constant 0 : i32
    %c0_i32_0 = arith.constant 0 : i32
    %c0_i32_1 = arith.constant 0 : i32
    return %c0_i32, %c0_i32_0 : i32, i32
  }
  func.func @transform_14(%arg0: i32) -> (i32, i32) {
    %c0_i32 = arith.constant 0 : i32
    %c0_i32_0 = arith.constant 0 : i32
    %c0_i32_1 = arith.constant 0 : i32
    return %c0_i32, %c0_i32_0 : i32, i32
  }
  func.func @transform_15(%arg0: i32) -> (i32, i32) {
    %c0_i32 = arith.constant 0 : i32
    %c0_i32_0 = arith.constant 0 : i32
    return %arg0, %c0_i32 : i32, i32
  }
}

</mosaic_0001>

<llo_original>
// kernel: tpu_custom_call.1
$region0: #{tpu_custom_call.1}
  #allocation0 [shape = 'u32[]', space=smem, size = 0x4, offset = 0x4, fixed_abs, tag = 'smem constant byte address 0x4 - core index']
  #allocation1 [shape = 'u32[144,128]{1,0:T(1,128)}', space=vmem, size = 0x12000, scoped, tag = 'internal scratch']
  %s0 = inlined_call_operand.hbm [shape: f32[8,32], index: 0, kind: input, shape index: {}]
  %s1 = inlined_call_operand.hbm [shape: bf16[32,512], index: 1, kind: input, shape index: {}]
  %s2 = inlined_call_operand.vmem [shape: f32[1,512], index: 2, kind: input, shape index: {}]
  %s3 = inlined_call_operand.vmem [shape: f32[1,512], index: 3, kind: input, shape index: {}]
  %s4 = inlined_call_operand.vmem [shape: f32[1,512], index: 4, kind: input, shape index: {}]
  %s5 = inlined_call_operand.hbm [shape: bf16[512,256], index: 5, kind: input, shape index: {}]
  %s6 = inlined_call_operand.vmem [shape: f32[1,256], index: 6, kind: input, shape index: {}]
  %s7 = inlined_call_operand.vmem [shape: f32[1,256], index: 7, kind: input, shape index: {}]
  %s8 = inlined_call_operand.vmem [shape: f32[1,256], index: 8, kind: input, shape index: {}]
  %s9 = inlined_call_operand.hbm [shape: bf16[256,128], index: 9, kind: input, shape index: {}]
  %s10 = inlined_call_operand.vmem [shape: f32[1,128], index: 10, kind: input, shape index: {}]
  %s11 = inlined_call_operand.vmem [shape: f32[1,128], index: 11, kind: input, shape index: {}]
  %s12 = inlined_call_operand.vmem [shape: f32[1,128], index: 12, kind: input, shape index: {}]
  %s13 = inlined_call_operand.hbm [shape: bf16[128,128], index: 13, kind: input, shape index: {}]
  %s14 = inlined_call_operand.vmem [shape: f32[1,128], index: 14, kind: input, shape index: {}]
  %s15 = inlined_call_operand.hbm [shape: bf16[8,128], index: 15, kind: output, shape index: {}]
  %s16 = sld [smem:[#allocation0]]
  $region90: #{tpu_custom_call.1} parent=0
    _
  %s18 = ssub.s32 1, %s16
  %s19 = scalar_select 0, %s18, %s16
  $region1: #{tpu_custom_call.1} parent=0
    #allocation2 [shape = 'u8[4096]{0}', space=vmem, size = 0x1000, scoped, tag = 'input window, operand 0, single buffered']
    #allocation3 [shape = 's32[1]{0}', space=sflag, size = 0x4, scoped, tag = 'scoped memory for tpu_custom_call.1']
    #allocation4 [shape = 's32[1]{0}', space=sflag, size = 0x4, scoped, tag = 'scoped memory for tpu_custom_call.1']
    #allocation5 [shape = 'u8[32768]{0}', space=vmem, size = 0x8000, scoped, tag = 'input window, operand 1, single buffered']
    #allocation6 [shape = 's32[1]{0}', space=sflag, size = 0x4, scoped, tag = 'scoped memory for tpu_custom_call.1']
    #allocation7 [shape = 'u8[262144]{0}', space=vmem, size = 0x40000, scoped, tag = 'input window, operand 5, single buffered']
    #allocation8 [shape = 'u8[65536]{0}', space=vmem, size = 0x10000, scoped, tag = 'input window, operand 9, single buffered']
    #allocation9 [shape = 's32[1]{0}', space=sflag, size = 0x4, scoped, tag = 'scoped memory for tpu_custom_call.1']
    #allocation10 [shape = 'u8[32768]{0}', space=vmem, size = 0x8000, scoped, tag = 'input window, operand 13, single buffered']
    #allocation11 [shape = 'u8[2048]{0}', space=vmem, size = 0x800, scoped, tag = 'output window, operand 0, single buffered']
    %20 = vsyncpa [#allocation3], 0
    %21 = vsyncpa [#allocation6], 0
    %22 = vsyncpa [#allocation9], 0
    %23 = vsyncpa [#allocation4], 0
    // Predicated region
    $region2: #{tpu_custom_call.1} parent=1 // pred_check
      _
    $region3: #{tpu_custom_call.1} parent=1 // pred_check_branch
      %25 = sbr.rel (0) target = $region5
    $region4: #{tpu_custom_call.1} parent=1 // pred_region
      %s27 = ssub.s32 128, 128
      %28 = vsyncadd [#allocation3], %s27
      %s30 = sshll.u32 [#allocation2], 4
      %s31 = int_to_ptr.vmem [resolvable:$true] %s30
      %33 = dma.hbm_to_vmem [thread:$0]  %s0, 128, %s31, [#allocation3]
    $region5: #{tpu_custom_call.1} parent=1 // pred_fallthru
      _
    // Predicated region
    $region6: #{tpu_custom_call.1} parent=1 // pred_check
      _
    $region7: #{tpu_custom_call.1} parent=1 // pred_check_branch
      %35 = sbr.rel (0) target = $region9
    $region8: #{tpu_custom_call.1} parent=1 // pred_region
      %s37 = ssub.s32 1024, 1024
      %38 = vsyncadd [#allocation6], %s37
      %s39 = sshll.u32 [#allocation5], 4
      %s40 = int_to_ptr.vmem [resolvable:$true] %s39
      %45 = dma.hbm_to_vmem [thread:$0]  %s1, 1024, %s40, [#allocation6], 256, 256, 16
    $region9: #{tpu_custom_call.1} parent=1 // pred_fallthru
      _
    // Predicated region
    $region10: #{tpu_custom_call.1} parent=1 // pred_check
      _
    $region11: #{tpu_custom_call.1} parent=1 // pred_check_branch
      %47 = sbr.rel (0) target = $region13
    $region12: #{tpu_custom_call.1} parent=1 // pred_region
      _
    $region13: #{tpu_custom_call.1} parent=1 // pred_fallthru
      _
    // Predicated region
    $region14: #{tpu_custom_call.1} parent=1 // pred_check
      _
    $region15: #{tpu_custom_call.1} parent=1 // pred_check_branch
      %49 = sbr.rel (0) target = $region17
    $region16: #{tpu_custom_call.1} parent=1 // pred_region
      _
    $region17: #{tpu_custom_call.1} parent=1 // pred_fallthru
      _
    // Predicated region
    $region18: #{tpu_custom_call.1} parent=1 // pred_check
      _
    $region19: #{tpu_custom_call.1} parent=1 // pred_check_branch
      %51 = sbr.rel (0) target = $region21
    $region20: #{tpu_custom_call.1} parent=1 // pred_region
      _
    $region21: #{tpu_custom_call.1} parent=1 // pred_fallthru
      _
    // Predicated region
    $region22: #{tpu_custom_call.1} parent=1 // pred_check
      _
    $region23: #{tpu_custom_call.1} parent=1 // pred_check_branch
      %53 = sbr.rel (0) target = $region25
    $region24: #{tpu_custom_call.1} parent=1 // pred_region
      %s55 = ssub.s32 8192, 8192
      %56 = vsyncadd [#allocation6], %s55
      %s57 = sshll.u32 [#allocation7], 4
      %s58 = int_to_ptr.vmem [resolvable:$true] %s57
      %63 = dma.hbm_to_vmem [thread:$0]  %s5, 8192, %s58, [#allocation6], 128, 128, 8
    $region25: #{tpu_custom_call.1} parent=1 // pred_fallthru
      _
    // Predicated region
    $region26: #{tpu_custom_call.1} parent=1 // pred_check
      _
    $region27: #{tpu_custom_call.1} parent=1 // pred_check_branch
      %65 = sbr.rel (0) target = $region29
    $region28: #{tpu_custom_call.1} parent=1 // pred_region
      _
    $region29: #{tpu_custom_call.1} parent=1 // pred_fallthru
      _
    // Predicated region
    $region30: #{tpu_custom_call.1} parent=1 // pred_check
      _
    $region31: #{tpu_custom_call.1} parent=1 // pred_check_branch
      %67 = sbr.rel (0) target = $region33
    $region32: #{tpu_custom_call.1} parent=1 // pred_region
      _
    $region33: #{tpu_custom_call.1} parent=1 // pred_fallthru
      _
    // Predicated region
    $region34: #{tpu_custom_call.1} parent=1 // pred_check
      _
    $region35: #{tpu_custom_call.1} parent=1 // pred_check_branch
      %69 = sbr.rel (0) target = $region37
    $region36: #{tpu_custom_call.1} parent=1 // pred_region
      _
    $region37: #{tpu_custom_call.1} parent=1 // pred_fallthru
      _
    // Predicated region
    $region38: #{tpu_custom_call.1} parent=1 // pred_check
      _
    $region39: #{tpu_custom_call.1} parent=1 // pred_check_branch
      %71 = sbr.rel (0) target = $region41
    $region40: #{tpu_custom_call.1} parent=1 // pred_region
      %s73 = ssub.s32 2048, 2048
      %74 = vsyncadd [#allocation9], %s73
      %s75 = sshll.u32 [#allocation8], 4
      %s76 = int_to_ptr.vmem [resolvable:$true] %s75
      %81 = dma.hbm_to_vmem [thread:$0]  %s9, 2048, %s76, [#allocation9], 64, 64, 4
    $region41: #{tpu_custom_call.1} parent=1 // pred_fallthru
      _
    // Predicated region
    $region42: #{tpu_custom_call.1} parent=1 // pred_check
      _
    $region43: #{tpu_custom_call.1} parent=1 // pred_check_branch
      %83 = sbr.rel (0) target = $region45
    $region44: #{tpu_custom_call.1} parent=1 // pred_region
      _
    $region45: #{tpu_custom_call.1} parent=1 // pred_fallthru
      _
    // Predicated region
    $region46: #{tpu_custom_call.1} parent=1 // pred_check
      _
    $region47: #{tpu_custom_call.1} parent=1 // pred_check_branch
      %85 = sbr.rel (0) target = $region49
    $region48: #{tpu_custom_call.1} parent=1 // pred_region
      _
    $region49: #{tpu_custom_call.1} parent=1 // pred_fallthru
      _
    // Predicated region
    $region50: #{tpu_custom_call.1} parent=1 // pred_check
      _
    $region51: #{tpu_custom_call.1} parent=1 // pred_check_branch
      %87 = sbr.rel (0) target = $region53
    $region52: #{tpu_custom_call.1} parent=1 // pred_region
      _
    $region53: #{tpu_custom_call.1} parent=1 // pred_fallthru
      _
    // Predicated region
    $region54: #{tpu_custom_call.1} parent=1 // pred_check
      _
    $region55: #{tpu_custom_call.1} parent=1 // pred_check_branch
      %89 = sbr.rel (0) target = $region57
    $region56: #{tpu_custom_call.1} parent=1 // pred_region
      %s91 = ssub.s32 1024, 1024
      %92 = vsyncadd [#allocation9], %s91
      %s93 = sshll.u32 [#allocation10], 4
      %s94 = int_to_ptr.vmem [resolvable:$true] %s93
      %99 = dma.hbm_to_vmem [thread:$0]  %s13, 1024, %s94, [#allocation9], 64, 64, 4
    $region57: #{tpu_custom_call.1} parent=1 // pred_fallthru
      _
    // Predicated region
    $region58: #{tpu_custom_call.1} parent=1 // pred_check
      _
    $region59: #{tpu_custom_call.1} parent=1 // pred_check_branch
      %101 = sbr.rel (0) target = $region61
    $region60: #{tpu_custom_call.1} parent=1 // pred_region
      _
    $region61: #{tpu_custom_call.1} parent=1 // pred_fallthru
      _
    // Predicated region
    $region62: #{tpu_custom_call.1} parent=1 // pred_check
      _
    $region63: #{tpu_custom_call.1} parent=1 // pred_check_branch
      %103 = sbr.rel (0) target = $region65
    $region64: #{tpu_custom_call.1} parent=1 // pred_region
      %104 = dma.done [#allocation3], 128
    $region65: #{tpu_custom_call.1} parent=1 // pred_fallthru
      _
    // Predicated region
    $region66: #{tpu_custom_call.1} parent=1 // pred_check
      _
    $region67: #{tpu_custom_call.1} parent=1 // pred_check_branch
      %106 = sbr.rel (0) target = $region69
    $region68: #{tpu_custom_call.1} parent=1 // pred_region
      %107 = dma.done [#allocation6], 1024
    $region69: #{tpu_custom_call.1} parent=1 // pred_fallthru
      _
    // Predicated region
    $region70: #{tpu_custom_call.1} parent=1 // pred_check
      _
    $region71: #{tpu_custom_call.1} parent=1 // pred_check_branch
      %109 = sbr.rel (0) target = $region73
    $region72: #{tpu_custom_call.1} parent=1 // pred_region
      %110 = dma.done [#allocation6], 8192
    $region73: #{tpu_custom_call.1} parent=1 // pred_fallthru
      _
    // Predicated region
    $region74: #{tpu_custom_call.1} parent=1 // pred_check
      _
    $region75: #{tpu_custom_call.1} parent=1 // pred_check_branch
      %112 = sbr.rel (0) target = $region77
    $region76: #{tpu_custom_call.1} parent=1 // pred_region
      %113 = dma.done [#allocation9], 2048
    $region77: #{tpu_custom_call.1} parent=1 // pred_fallthru
      _
    // Predicated region
    $region78: #{tpu_custom_call.1} parent=1 // pred_check
      _
    $region79: #{tpu_custom_call.1} parent=1 // pred_check_branch
      %115 = sbr.rel (0) target = $region81
    $region80: #{tpu_custom_call.1} parent=1 // pred_region
      %116 = dma.done [#allocation9], 1024
    $region81: #{tpu_custom_call.1} parent=1 // pred_fallthru
      _
    %v118 = vld [vmem:[#allocation2] sm:$0xff]
    %v119 = vpack.c.bf16 %v118, %v118
    %v120 = vld [vmem:[#allocation5] sm:$0xff]
    %v121 = vld [vmem:[#allocation5 + $0x8] sm:$0xff]
    %v122 = vld [vmem:[#allocation5 + $0x10] sm:$0xff]
    %v123 = vld [vmem:[#allocation5 + $0x18] sm:$0xff]
    %v124 = vld [vmem:[#allocation5 + $0x20] sm:$0xff]
    %v125 = vld [vmem:[#allocation5 + $0x28] sm:$0xff]
    %v126 = vld [vmem:[#allocation5 + $0x30] sm:$0xff]
    %v127 = vld [vmem:[#allocation5 + $0x38] sm:$0xff]
    %v128 = vld [vmem:[%s2] sm:$0xf]
    %v130 = vlaneseq
    %v131 = vshrl.u32 %v130, 7
    %v132 = vsub.s32 0, %v131
    %v133 = vrot.slane %v128, %v132
    %v134 = vlaneseq
    %v135 = vshrl.u32 %v134, 7
    %v136 = vsub.s32 1, %v135
    %v137 = vrot.slane %v128, %v136
    %v138 = vlaneseq
    %v139 = vshrl.u32 %v138, 7
    %v140 = vsub.s32 2, %v139
    %v141 = vrot.slane %v128, %v140
    %v142 = vlaneseq
    %v143 = vshrl.u32 %v142, 7
    %v144 = vsub.s32 3, %v143
    %v145 = vrot.slane %v128, %v144
    %v158 = vunpack.c.l.b16 %v120
    %v159 = vunpack.c.h.b16 %v120
    %v160 = vunpack.c.l.b16 %v121
    %v161 = vunpack.c.h.b16 %v121
    %v162 = vunpack.c.l.b16 %v122
    %v163 = vunpack.c.h.b16 %v122
    %v164 = vunpack.c.l.b16 %v123
    %v165 = vunpack.c.h.b16 %v123
    %v166 = vunpack.c.l.b16 %v124
    %v167 = vunpack.c.h.b16 %v124
    %v168 = vunpack.c.l.b16 %v125
    %v169 = vunpack.c.h.b16 %v125
    %v170 = vunpack.c.l.b16 %v126
    %v171 = vunpack.c.h.b16 %v126
    %v172 = vunpack.c.l.b16 %v127
    %v173 = vunpack.c.h.b16 %v127
    %v174 = vpack.c.b16 %v162, %v158
    %v175 = vpack.c.b16 %v163, %v159
    %v176 = vpack.c.b16 %v164, %v160
    %v177 = vpack.c.b16 %v165, %v161
    %v178 = vpack.c.b16 %v170, %v166
    %v179 = vpack.c.b16 %v171, %v167
    %v180 = vpack.c.b16 %v172, %v168
    %v181 = vpack.c.b16 %v173, %v169
    %vm190 = vcmask 261120
    %v192 = vsel %vm190, %v119, 0
    %194 = vmatprep.subr.bf16.mxu0 %v175
    %195 = vmatpush1.bf16.msra.mxu0 %v174
    %196 = vmatprep.subr.bf16.mxu0 %v179
    %197 = vmatpush1.bf16.msra.mxu0 %v178
    %198 = vmatprep.subr.bf16.mxu0 0
    %199 = vmatpush1.bf16.msra.mxu0 0
    %200 = vmatprep.subr.bf16.mxu0 0
    %201 = vmatpush1.bf16.msra.mxu0 0
    %202 = vmatprep.subr.bf16.mxu0 0
    %203 = vmatpush1.bf16.msra.mxu0 0
    %204 = vmatprep.subr.bf16.mxu0 0
    %205 = vmatpush1.bf16.msra.mxu0 0
    %206 = vmatprep.subr.bf16.mxu0 0
    %207 = vmatpush1.bf16.msra.mxu0 0
    %208 = vmatprep.subr.bf16.mxu0 0
    %209 = vmatpush1.bf16.msra.mxu0 0
    %210 = vmatprep.subr.bf16.mxu0 0
    %211 = vmatpush1.bf16.msra.mxu0 0
    %212 = vmatprep.subr.bf16.mxu0 0
    %213 = vmatpush1.bf16.msra.mxu0 0
    %214 = vmatprep.subr.bf16.mxu0 0
    %215 = vmatpush1.bf16.msra.mxu0 0
    %216 = vmatprep.subr.bf16.mxu0 0
    %217 = vmatpush1.bf16.msra.mxu0 0
    %218 = vmatprep.subr.bf16.mxu0 0
    %219 = vmatpush1.bf16.msra.mxu0 0
    %220 = vmatprep.subr.bf16.mxu0 0
    %221 = vmatpush1.bf16.msra.mxu0 0
    %222 = vmatprep.subr.bf16.mxu0 0
    %223 = vmatpush1.bf16.msra.mxu0 0
    %224 = vmatprep.subr.bf16.mxu0 0
    %225 = vmatpush1.bf16.msra.mxu0 0
    %226 = vmatprep.mubr.bf16.mxu0 0
    %227 = vmatmul.mubr.bf16.gmra.mrb[0].mxu0 %v192
    %v228 = vpop.f32.mrb[0].mxu0
    %v229 = vadd.f32 %v133, %v228
    %v230 = vpop.f32.mrb[0].mxu0
    %v231 = vadd.f32 %v137, %v230
    %v232 = vpop.f32.mrb[0].mxu0
    %v233 = vpop.f32.mrb[0].mxu0
    %234 = vdwg.mxu0
    %235 = vmatprep.subr.bf16.mxu0 %v177
    %236 = vmatpush1.bf16.msra.mxu0 %v176
    %237 = vmatprep.subr.bf16.mxu0 %v181
    %238 = vmatpush1.bf16.msra.mxu0 %v180
    %239 = vmatprep.subr.bf16.mxu0 0
    %240 = vmatpush1.bf16.msra.mxu0 0
    %241 = vmatprep.subr.bf16.mxu0 0
    %242 = vmatpush1.bf16.msra.mxu0 0
    %243 = vmatprep.subr.bf16.mxu0 0
    %244 = vmatpush1.bf16.msra.mxu0 0
    %245 = vmatprep.subr.bf16.mxu0 0
    %246 = vmatpush1.bf16.msra.mxu0 0
    %247 = vmatprep.subr.bf16.mxu0 0
    %248 = vmatpush1.bf16.msra.mxu0 0
    %249 = vmatprep.subr.bf16.mxu0 0
    %250 = vmatpush1.bf16.msra.mxu0 0
    %251 = vmatprep.subr.bf16.mxu0 0
    %252 = vmatpush1.bf16.msra.mxu0 0
    %253 = vmatprep.subr.bf16.mxu0 0
    %254 = vmatpush1.bf16.msra.mxu0 0
    %255 = vmatprep.subr.bf16.mxu0 0
    %256 = vmatpush1.bf16.msra.mxu0 0
    %257 = vmatprep.subr.bf16.mxu0 0
    %258 = vmatpush1.bf16.msra.mxu0 0
    %259 = vmatprep.subr.bf16.mxu0 0
    %260 = vmatpush1.bf16.msra.mxu0 0
    %261 = vmatprep.subr.bf16.mxu0 0
    %262 = vmatpush1.bf16.msra.mxu0 0
    %263 = vmatprep.subr.bf16.mxu0 0
    %264 = vmatpush1.bf16.msra.mxu0 0
    %265 = vmatprep.subr.bf16.mxu0 0
    %266 = vmatpush1.bf16.msra.mxu0 0
    %267 = vmatprep.mubr.bf16.mxu0 0
    %268 = vmatmul.mubr.bf16.gmra.mrb[0].mxu0 %v192
    %v269 = vpop.f32.mrb[0].mxu0
    %v270 = vadd.f32 %v141, %v269
    %v271 = vpop.f32.mrb[0].mxu0
    %v272 = vadd.f32 %v145, %v271
    %v273 = vpop.f32.mrb[0].mxu0
    %v274 = vpop.f32.mrb[0].mxu0
    %275 = vdwg.mxu0
    %v276 = vld [vmem:[%s3] sm:$0xf]
    %v277 = vld [vmem:[%s4] sm:$0xf]
    %v278 = vadd.f32 %v229, %v231
    %v279 = vadd.f32 %v278, %v270
    %v280 = vadd.f32 %v279, %v272
    %281 = vadd.xlane.f32.xlu0 %v280
    %v282 = vpop.xlane.xlu0 %281
    %v283 = vrcp.pop 512.0
    %v284 = vmul.f32 %v282, %v283
    %v285 = vmul.f32 %v229, %v229
    %v286 = vmul.f32 %v231, %v231
    %v287 = vmul.f32 %v270, %v270
    %v288 = vmul.f32 %v272, %v272
    %v289 = vadd.f32 %v285, %v286
    %v290 = vadd.f32 %v289, %v287
    %v291 = vadd.f32 %v290, %v288
    %292 = vadd.xlane.f32.xlu0 %v291
    %v293 = vpop.xlane.xlu0 %292
    %v294 = vmul.f32 %v293, %v283
    %v295 = vmul.f32 %v284, %v284
    %v296 = vsub.f32 %v294, %v295
    %v297 = vmax.f32 %v296, 0.0
    %v298 = vadd.f32 %v297, 1e-05
    %v299 = vrsqrt.pop %v298
    %v300 = vpack.c.bf16 %v229, %v229
    %v301 = vpack.c.bf16 %v231, %v231
    %v302 = vpack.c.bf16 %v270, %v270
    %v303 = vpack.c.bf16 %v272, %v272
    %v304 = vpack.c.bf16 %v284, %v284
    %v305 = vsub.bf16 %v300, %v304
    %v306 = vsub.bf16 %v301, %v304
    %v307 = vsub.bf16 %v302, %v304
    %v308 = vsub.bf16 %v303, %v304
    %v309 = vpack.c.bf16 %v299, %v299
    %v310 = vmul.bf16 %v305, %v309
    %v311 = vmul.bf16 %v306, %v309
    %v312 = vmul.bf16 %v307, %v309
    %v313 = vmul.bf16 %v308, %v309
    %v315 = vlaneseq
    %v316 = vshrl.u32 %v315, 7
    %v317 = vsub.s32 0, %v316
    %v318 = vrot.slane %v276, %v317
    %v319 = vlaneseq
    %v320 = vshrl.u32 %v319, 7
    %v321 = vsub.s32 1, %v320
    %v322 = vrot.slane %v276, %v321
    %v323 = vlaneseq
    %v324 = vshrl.u32 %v323, 7
    %v325 = vsub.s32 2, %v324
    %v326 = vrot.slane %v276, %v325
    %v327 = vlaneseq
    %v328 = vshrl.u32 %v327, 7
    %v329 = vsub.s32 3, %v328
    %v330 = vrot.slane %v276, %v329
    %v335 = vpack.c.bf16 %v318, %v318
    %v336 = vpack.c.bf16 %v322, %v322
    %v337 = vpack.c.bf16 %v326, %v326
    %v338 = vpack.c.bf16 %v330, %v330
    %v340 = vpack.i.b16 %v335, %v335
    %v342 = vlaneseq
    %v343 = vshrl.u32 %v342, 7
    %v344 = vsub.s32 0, %v343
    %v345 = vrot.slane %v340, %v344
    %v347 = vpack.i.b16 %v336, %v336
    %v349 = vlaneseq
    %v350 = vshrl.u32 %v349, 7
    %v351 = vsub.s32 0, %v350
    %v352 = vrot.slane %v347, %v351
    %v354 = vpack.i.b16 %v337, %v337
    %v356 = vlaneseq
    %v357 = vshrl.u32 %v356, 7
    %v358 = vsub.s32 0, %v357
    %v359 = vrot.slane %v354, %v358
    %v361 = vpack.i.b16 %v338, %v338
    %v363 = vlaneseq
    %v364 = vshrl.u32 %v363, 7
    %v365 = vsub.s32 0, %v364
    %v366 = vrot.slane %v361, %v365
    %v367 = vmul.bf16 %v310, %v345
    %v368 = vmul.bf16 %v311, %v352
    %v369 = vmul.bf16 %v312, %v359
    %v370 = vmul.bf16 %v313, %v366
    %v372 = vlaneseq
    %v373 = vshrl.u32 %v372, 7
    %v374 = vsub.s32 0, %v373
    %v375 = vrot.slane %v277, %v374
    %v376 = vlaneseq
    %v377 = vshrl.u32 %v376, 7
    %v378 = vsub.s32 1, %v377
    %v379 = vrot.slane %v277, %v378
    %v380 = vlaneseq
    %v381 = vshrl.u32 %v380, 7
    %v382 = vsub.s32 2, %v381
    %v383 = vrot.slane %v277, %v382
    %v384 = vlaneseq
    %v385 = vshrl.u32 %v384, 7
    %v386 = vsub.s32 3, %v385
    %v387 = vrot.slane %v277, %v386
    %v392 = vpack.c.bf16 %v375, %v375
    %v393 = vpack.c.bf16 %v379, %v379
    %v394 = vpack.c.bf16 %v383, %v383
    %v395 = vpack.c.bf16 %v387, %v387
    %v397 = vpack.i.b16 %v392, %v392
    %v399 = vlaneseq
    %v400 = vshrl.u32 %v399, 7
    %v401 = vsub.s32 0, %v400
    %v402 = vrot.slane %v397, %v401
    %v404 = vpack.i.b16 %v393, %v393
    %v406 = vlaneseq
    %v407 = vshrl.u32 %v406, 7
    %v408 = vsub.s32 0, %v407
    %v409 = vrot.slane %v404, %v408
    %v411 = vpack.i.b16 %v394, %v394
    %v413 = vlaneseq
    %v414 = vshrl.u32 %v413, 7
    %v415 = vsub.s32 0, %v414
    %v416 = vrot.slane %v411, %v415
    %v418 = vpack.i.b16 %v395, %v395
    %v420 = vlaneseq
    %v421 = vshrl.u32 %v420, 7
    %v422 = vsub.s32 0, %v421
    %v423 = vrot.slane %v418, %v422
    %v424 = vadd.bf16 %v367, %v402
    %v425 = vadd.bf16 %v368, %v409
    %v426 = vadd.bf16 %v369, %v416
    %v427 = vadd.bf16 %v370, %v423
    %v428 = vmax.bf16 %v424, 0
    %v429 = vmax.bf16 %v425, 0
    %v430 = vmax.bf16 %v426, 0
    %v431 = vmax.bf16 %v427, 0
    %v432 = vld [vmem:[#allocation7] sm:$0xff]
    %v433 = vld [vmem:[#allocation7 + $0x8] sm:$0xff]
    %v434 = vld [vmem:[#allocation7 + $0x10] sm:$0xff]
    %v435 = vld [vmem:[#allocation7 + $0x18] sm:$0xff]
    %v436 = vld [vmem:[#allocation7 + $0x20] sm:$0xff]
    %v437 = vld [vmem:[#allocation7 + $0x28] sm:$0xff]
    %v438 = vld [vmem:[#allocation7 + $0x30] sm:$0xff]
    %v439 = vld [vmem:[#allocation7 + $0x38] sm:$0xff]
    %v440 = vld [vmem:[#allocation7 + $0x40] sm:$0xff]
    %v441 = vld [vmem:[#allocation7 + $0x48] sm:$0xff]
    %v442 = vld [vmem:[#allocation7 + $0x50] sm:$0xff]
    %v443 = vld [vmem:[#allocation7 + $0x58] sm:$0xff]
    %v444 = vld [vmem:[#allocation7 + $0x60] sm:$0xff]
    %v445 = vld [vmem:[#allocation7 + $0x68] sm:$0xff]
    %v446 = vld [vmem:[#allocation7 + $0x70] sm:$0xff]
    %v447 = vld [vmem:[#allocation7 + $0x78] sm:$0xff]
    %v448 = vld [vmem:[#allocation7 + $0x80] sm:$0xff]
    %v449 = vld [vmem:[#allocation7 + $0x88] sm:$0xff]
    %v450 = vld [vmem:[#allocation7 + $0x90] sm:$0xff]
    %v451 = vld [vmem:[#allocation7 + $0x98] sm:$0xff]
    %v452 = vld [vmem:[#allocation7 + $0xa0] sm:$0xff]
    %v453 = vld [vmem:[#allocation7 + $0xa8] sm:$0xff]
    %v454 = vld [vmem:[#allocation7 + $0xb0] sm:$0xff]
    %v455 = vld [vmem:[#allocation7 + $0xb8] sm:$0xff]
    %v456 = vld [vmem:[#allocation7 + $0xc0] sm:$0xff]
    %v457 = vld [vmem:[#allocation7 + $0xc8] sm:$0xff]
    %v458 = vld [vmem:[#allocation7 + $0xd0] sm:$0xff]
    %v459 = vld [vmem:[#allocation7 + $0xd8] sm:$0xff]
    %v460 = vld [vmem:[#allocation7 + $0xe0] sm:$0xff]
    %v461 = vld [vmem:[#allocation7 + $0xe8] sm:$0xff]
    %v462 = vld [vmem:[#allocation7 + $0xf0] sm:$0xff]
    %v463 = vld [vmem:[#allocation7 + $0xf8] sm:$0xff]
    %v464 = vld [vmem:[#allocation7 + $0x100] sm:$0xff]
    %v465 = vld [vmem:[#allocation7 + $0x108] sm:$0xff]
    %v466 = vld [vmem:[#allocation7 + $0x110] sm:$0xff]
    %v467 = vld [vmem:[#allocation7 + $0x118] sm:$0xff]
    %v468 = vld [vmem:[#allocation7 + $0x120] sm:$0xff]
    %v469 = vld [vmem:[#allocation7 + $0x128] sm:$0xff]
    %v470 = vld [vmem:[#allocation7 + $0x130] sm:$0xff]
    %v471 = vld [vmem:[#allocation7 + $0x138] sm:$0xff]
    %v472 = vld [vmem:[#allocation7 + $0x140] sm:$0xff]
    %v473 = vld [vmem:[#allocation7 + $0x148] sm:$0xff]
    %v474 = vld [vmem:[#allocation7 + $0x150] sm:$0xff]
    %v475 = vld [vmem:[#allocation7 + $0x158] sm:$0xff]
    %v476 = vld [vmem:[#allocation7 + $0x160] sm:$0xff]
    %v477 = vld [vmem:[#allocation7 + $0x168] sm:$0xff]
    %v478 = vld [vmem:[#allocation7 + $0x170] sm:$0xff]
    %v479 = vld [vmem:[#allocation7 + $0x178] sm:$0xff]
    %v480 = vld [vmem:[#allocation7 + $0x180] sm:$0xff]
    %v481 = vld [vmem:[#allocation7 + $0x188] sm:$0xff]
    %v482 = vld [vmem:[#allocation7 + $0x190] sm:$0xff]
    %v483 = vld [vmem:[#allocation7 + $0x198] sm:$0xff]
    %v484 = vld [vmem:[#allocation7 + $0x1a0] sm:$0xff]
    %v485 = vld [vmem:[#allocation7 + $0x1a8] sm:$0xff]
    %v486 = vld [vmem:[#allocation7 + $0x1b0] sm:$0xff]
    %v487 = vld [vmem:[#allocation7 + $0x1b8] sm:$0xff]
    %v488 = vld [vmem:[#allocation7 + $0x1c0] sm:$0xff]
    %v489 = vld [vmem:[#allocation7 + $0x1c8] sm:$0xff]
    %v490 = vld [vmem:[#allocation7 + $0x1d0] sm:$0xff]
    %v491 = vld [vmem:[#allocation7 + $0x1d8] sm:$0xff]
    %v492 = vld [vmem:[#allocation7 + $0x1e0] sm:$0xff]
    %v493 = vld [vmem:[#allocation7 + $0x1e8] sm:$0xff]
    %v494 = vld [vmem:[#allocation7 + $0x1f0] sm:$0xff]
    %v495 = vld [vmem:[#allocation7 + $0x1f8] sm:$0xff]
    %v496 = vld [vmem:[%s6] sm:$0x3]
    %v498 = vlaneseq
    %v499 = vshrl.u32 %v498, 7
    %v500 = vsub.s32 0, %v499
    %v501 = vrot.slane %v496, %v500
    %v502 = vlaneseq
    %v503 = vshrl.u32 %v502, 7
    %v504 = vsub.s32 1, %v503
    %v505 = vrot.slane %v496, %v504
    %v572 = vunpack.c.l.b16 %v432
    %v573 = vunpack.c.h.b16 %v432
    %v574 = vunpack.c.l.b16 %v433
    %v575 = vunpack.c.h.b16 %v433
    %v576 = vunpack.c.l.b16 %v434
    %v577 = vunpack.c.h.b16 %v434
    %v578 = vunpack.c.l.b16 %v435
    %v579 = vunpack.c.h.b16 %v435
    %v580 = vunpack.c.l.b16 %v436
    %v581 = vunpack.c.h.b16 %v436
    %v582 = vunpack.c.l.b16 %v437
    %v583 = vunpack.c.h.b16 %v437
    %v584 = vunpack.c.l.b16 %v438
    %v585 = vunpack.c.h.b16 %v438
    %v586 = vunpack.c.l.b16 %v439
    %v587 = vunpack.c.h.b16 %v439
    %v588 = vunpack.c.l.b16 %v440
    %v589 = vunpack.c.h.b16 %v440
    %v590 = vunpack.c.l.b16 %v441
    %v591 = vunpack.c.h.b16 %v441
    %v592 = vunpack.c.l.b16 %v442
    %v593 = vunpack.c.h.b16 %v442
    %v594 = vunpack.c.l.b16 %v443
    %v595 = vunpack.c.h.b16 %v443
    %v596 = vunpack.c.l.b16 %v444
    %v597 = vunpack.c.h.b16 %v444
    %v598 = vunpack.c.l.b16 %v445
    %v599 = vunpack.c.h.b16 %v445
    %v600 = vunpack.c.l.b16 %v446
    %v601 = vunpack.c.h.b16 %v446
    %v602 = vunpack.c.l.b16 %v447
    %v603 = vunpack.c.h.b16 %v447
    %v604 = vunpack.c.l.b16 %v448
    %v605 = vunpack.c.h.b16 %v448
    %v606 = vunpack.c.l.b16 %v449
    %v607 = vunpack.c.h.b16 %v449
    %v608 = vunpack.c.l.b16 %v450
    %v609 = vunpack.c.h.b16 %v450
    %v610 = vunpack.c.l.b16 %v451
    %v611 = vunpack.c.h.b16 %v451
    %v612 = vunpack.c.l.b16 %v452
    %v613 = vunpack.c.h.b16 %v452
    %v614 = vunpack.c.l.b16 %v453
    %v615 = vunpack.c.h.b16 %v453
    %v616 = vunpack.c.l.b16 %v454
    %v617 = vunpack.c.h.b16 %v454
    %v618 = vunpack.c.l.b16 %v455
    %v619 = vunpack.c.h.b16 %v455
    %v620 = vunpack.c.l.b16 %v456
    %v621 = vunpack.c.h.b16 %v456
    %v622 = vunpack.c.l.b16 %v457
    %v623 = vunpack.c.h.b16 %v457
    %v624 = vunpack.c.l.b16 %v458
    %v625 = vunpack.c.h.b16 %v458
    %v626 = vunpack.c.l.b16 %v459
    %v627 = vunpack.c.h.b16 %v459
    %v628 = vunpack.c.l.b16 %v460
    %v629 = vunpack.c.h.b16 %v460
    %v630 = vunpack.c.l.b16 %v461
    %v631 = vunpack.c.h.b16 %v461
    %v632 = vunpack.c.l.b16 %v462
    %v633 = vunpack.c.h.b16 %v462
    %v634 = vunpack.c.l.b16 %v463
    %v635 = vunpack.c.h.b16 %v463
    %v636 = vunpack.c.l.b16 %v464
    %v637 = vunpack.c.h.b16 %v464
    %v638 = vunpack.c.l.b16 %v465
    %v639 = vunpack.c.h.b16 %v465
    %v640 = vunpack.c.l.b16 %v466
    %v641 = vunpack.c.h.b16 %v466
    %v642 = vunpack.c.l.b16 %v467
    %v643 = vunpack.c.h.b16 %v467
    %v644 = vunpack.c.l.b16 %v468
    %v645 = vunpack.c.h.b16 %v468
    %v646 = vunpack.c.l.b16 %v469
    %v647 = vunpack.c.h.b16 %v469
    %v648 = vunpack.c.l.b16 %v470
    %v649 = vunpack.c.h.b16 %v470
    %v650 = vunpack.c.l.b16 %v471
    %v651 = vunpack.c.h.b16 %v471
    %v652 = vunpack.c.l.b16 %v472
    %v653 = vunpack.c.h.b16 %v472
    %v654 = vunpack.c.l.b16 %v473
    %v655 = vunpack.c.h.b16 %v473
    %v656 = vunpack.c.l.b16 %v474
    %v657 = vunpack.c.h.b16 %v474
    %v658 = vunpack.c.l.b16 %v475
    %v659 = vunpack.c.h.b16 %v475
    %v660 = vunpack.c.l.b16 %v476
    %v661 = vunpack.c.h.b16 %v476
    %v662 = vunpack.c.l.b16 %v477
    %v663 = vunpack.c.h.b16 %v477
    %v664 = vunpack.c.l.b16 %v478
    %v665 = vunpack.c.h.b16 %v478
    %v666 = vunpack.c.l.b16 %v479
    %v667 = vunpack.c.h.b16 %v479
    %v668 = vunpack.c.l.b16 %v480
    %v669 = vunpack.c.h.b16 %v480
    %v670 = vunpack.c.l.b16 %v481
    %v671 = vunpack.c.h.b16 %v481
    %v672 = vunpack.c.l.b16 %v482
    %v673 = vunpack.c.h.b16 %v482
    %v674 = vunpack.c.l.b16 %v483
    %v675 = vunpack.c.h.b16 %v483
    %v676 = vunpack.c.l.b16 %v484
    %v677 = vunpack.c.h.b16 %v484
    %v678 = vunpack.c.l.b16 %v485
    %v679 = vunpack.c.h.b16 %v485
    %v680 = vunpack.c.l.b16 %v486
    %v681 = vunpack.c.h.b16 %v486
    %v682 = vunpack.c.l.b16 %v487
    %v683 = vunpack.c.h.b16 %v487
    %v684 = vunpack.c.l.b16 %v488
    %v685 = vunpack.c.h.b16 %v488
    %v686 = vunpack.c.l.b16 %v489
    %v687 = vunpack.c.h.b16 %v489
    %v688 = vunpack.c.l.b16 %v490
    %v689 = vunpack.c.h.b16 %v490
    %v690 = vunpack.c.l.b16 %v491
    %v691 = vunpack.c.h.b16 %v491
    %v692 = vunpack.c.l.b16 %v492
    %v693 = vunpack.c.h.b16 %v492
    %v694 = vunpack.c.l.b16 %v493
    %v695 = vunpack.c.h.b16 %v493
    %v696 = vunpack.c.l.b16 %v494
    %v697 = vunpack.c.h.b16 %v494
    %v698 = vunpack.c.l.b16 %v495
    %v699 = vunpack.c.h.b16 %v495
    %v700 = vpack.c.b16 %v574, %v572
    %v701 = vpack.c.b16 %v575, %v573
    %v702 = vpack.c.b16 %v578, %v576
    %v703 = vpack.c.b16 %v579, %v577
    %v704 = vpack.c.b16 %v582, %v580
    %v705 = vpack.c.b16 %v583, %v581
    %v706 = vpack.c.b16 %v586, %v584
    %v707 = vpack.c.b16 %v587, %v585
    %v708 = vpack.c.b16 %v590, %v588
    %v709 = vpack.c.b16 %v591, %v589
    %v710 = vpack.c.b16 %v594, %v592
    %v711 = vpack.c.b16 %v595, %v593
    %v712 = vpack.c.b16 %v598, %v596
    %v713 = vpack.c.b16 %v599, %v597
    %v714 = vpack.c.b16 %v602, %v600
    %v715 = vpack.c.b16 %v603, %v601
    %v716 = vpack.c.b16 %v606, %v604
    %v717 = vpack.c.b16 %v607, %v605
    %v718 = vpack.c.b16 %v610, %v608
    %v719 = vpack.c.b16 %v611, %v609
    %v720 = vpack.c.b16 %v614, %v612
    %v721 = vpack.c.b16 %v615, %v613
    %v722 = vpack.c.b16 %v618, %v616
    %v723 = vpack.c.b16 %v619, %v617
    %v724 = vpack.c.b16 %v622, %v620
    %v725 = vpack.c.b16 %v623, %v621
    %v726 = vpack.c.b16 %v626, %v624
    %v727 = vpack.c.b16 %v627, %v625
    %v728 = vpack.c.b16 %v630, %v628
    %v729 = vpack.c.b16 %v631, %v629
    %v730 = vpack.c.b16 %v634, %v632
    %v731 = vpack.c.b16 %v635, %v633
    %v732 = vpack.c.b16 %v638, %v636
    %v733 = vpack.c.b16 %v639, %v637
    %v734 = vpack.c.b16 %v642, %v640
    %v735 = vpack.c.b16 %v643, %v641
    %v736 = vpack.c.b16 %v646, %v644
    %v737 = vpack.c.b16 %v647, %v645
    %v738 = vpack.c.b16 %v650, %v648
    %v739 = vpack.c.b16 %v651, %v649
    %v740 = vpack.c.b16 %v654, %v652
    %v741 = vpack.c.b16 %v655, %v653
    %v742 = vpack.c.b16 %v658, %v656
    %v743 = vpack.c.b16 %v659, %v657
    %v744 = vpack.c.b16 %v662, %v660
    %v745 = vpack.c.b16 %v663, %v661
    %v746 = vpack.c.b16 %v666, %v664
    %v747 = vpack.c.b16 %v667, %v665
    %v748 = vpack.c.b16 %v670, %v668
    %v749 = vpack.c.b16 %v671, %v669
    %v750 = vpack.c.b16 %v674, %v672
    %v751 = vpack.c.b16 %v675, %v673
    %v752 = vpack.c.b16 %v678, %v676
    %v753 = vpack.c.b16 %v679, %v677
    %v754 = vpack.c.b16 %v682, %v680
    %v755 = vpack.c.b16 %v683, %v681
    %v756 = vpack.c.b16 %v686, %v684
    %v757 = vpack.c.b16 %v687, %v685
    %v758 = vpack.c.b16 %v690, %v688
    %v759 = vpack.c.b16 %v691, %v689
    %v760 = vpack.c.b16 %v694, %v692
    %v761 = vpack.c.b16 %v695, %v693
    %v762 = vpack.c.b16 %v698, %v696
    %v763 = vpack.c.b16 %v699, %v697
    %828 = vmatprep.subr.bf16.mxu0 %v701
    %829 = vmatpush1.bf16.msra.mxu0 %v700
    %830 = vmatprep.subr.bf16.mxu0 %v703
    %831 = vmatpush1.bf16.msra.mxu0 %v702
    %832 = vmatprep.subr.bf16.mxu0 %v705
    %833 = vmatpush1.bf16.msra.mxu0 %v704
    %834 = vmatprep.subr.bf16.mxu0 %v707
    %835 = vmatpush1.bf16.msra.mxu0 %v706
    %836 = vmatprep.subr.bf16.mxu0 %v709
    %837 = vmatpush1.bf16.msra.mxu0 %v708
    %838 = vmatprep.subr.bf16.mxu0 %v711
    %839 = vmatpush1.bf16.msra.mxu0 %v710
    %840 = vmatprep.subr.bf16.mxu0 %v713
    %841 = vmatpush1.bf16.msra.mxu0 %v712
    %842 = vmatprep.subr.bf16.mxu0 %v715
    %843 = vmatpush1.bf16.msra.mxu0 %v714
    %844 = vmatprep.subr.bf16.mxu0 %v717
    %845 = vmatpush1.bf16.msra.mxu0 %v716
    %846 = vmatprep.subr.bf16.mxu0 %v719
    %847 = vmatpush1.bf16.msra.mxu0 %v718
    %848 = vmatprep.subr.bf16.mxu0 %v721
    %849 = vmatpush1.bf16.msra.mxu0 %v720
    %850 = vmatprep.subr.bf16.mxu0 %v723
    %851 = vmatpush1.bf16.msra.mxu0 %v722
    %852 = vmatprep.subr.bf16.mxu0 %v725
    %853 = vmatpush1.bf16.msra.mxu0 %v724
    %854 = vmatprep.subr.bf16.mxu0 %v727
    %855 = vmatpush1.bf16.msra.mxu0 %v726
    %856 = vmatprep.subr.bf16.mxu0 %v729
    %857 = vmatpush1.bf16.msra.mxu0 %v728
    %858 = vmatprep.subr.bf16.mxu0 %v731
    %859 = vmatpush1.bf16.msra.mxu0 %v730
    %860 = vmatprep.mubr.bf16.mxu0 %v429
    %861 = vmatmul.mubr.bf16.gmra.mrb[0].mxu0 %v428
    %v862 = vpop.f32.mrb[0].mxu0
    %v863 = vadd.f32 %v501, %v862
    %v864 = vpop.f32.mrb[0].mxu0
    %v865 = vadd.f32 %v505, %v864
    %v866 = vpop.f32.mrb[0].mxu0
    %v867 = vpop.f32.mrb[0].mxu0
    %868 = vdwg.mxu0
    %869 = vmatprep.subr.bf16.mxu0 %v733
    %870 = vmatpush1.bf16.msra.mxu0 %v732
    %871 = vmatprep.subr.bf16.mxu0 %v735
    %872 = vmatpush1.bf16.msra.mxu0 %v734
    %873 = vmatprep.subr.bf16.mxu0 %v737
    %874 = vmatpush1.bf16.msra.mxu0 %v736
    %875 = vmatprep.subr.bf16.mxu0 %v739
    %876 = vmatpush1.bf16.msra.mxu0 %v738
    %877 = vmatprep.subr.bf16.mxu0 %v741
    %878 = vmatpush1.bf16.msra.mxu0 %v740
    %879 = vmatprep.subr.bf16.mxu0 %v743
    %880 = vmatpush1.bf16.msra.mxu0 %v742
    %881 = vmatprep.subr.bf16.mxu0 %v745
    %882 = vmatpush1.bf16.msra.mxu0 %v744
    %883 = vmatprep.subr.bf16.mxu0 %v747
    %884 = vmatpush1.bf16.msra.mxu0 %v746
    %885 = vmatprep.subr.bf16.mxu0 %v749
    %886 = vmatpush1.bf16.msra.mxu0 %v748
    %887 = vmatprep.subr.bf16.mxu0 %v751
    %888 = vmatpush1.bf16.msra.mxu0 %v750
    %889 = vmatprep.subr.bf16.mxu0 %v753
    %890 = vmatpush1.bf16.msra.mxu0 %v752
    %891 = vmatprep.subr.bf16.mxu0 %v755
    %892 = vmatpush1.bf16.msra.mxu0 %v754
    %893 = vmatprep.subr.bf16.mxu0 %v757
    %894 = vmatpush1.bf16.msra.mxu0 %v756
    %895 = vmatprep.subr.bf16.mxu0 %v759
    %896 = vmatpush1.bf16.msra.mxu0 %v758
    %897 = vmatprep.subr.bf16.mxu0 %v761
    %898 = vmatpush1.bf16.msra.mxu0 %v760
    %899 = vmatprep.subr.bf16.mxu0 %v763
    %900 = vmatpush1.bf16.msra.mxu0 %v762
    %901 = vmatprep.mubr.bf16.mxu0 %v431
    %902 = vmatmul.mubr.bf16.gmra.mrb[0].mxu0 %v430
    %v903 = vpop.f32.mrb[0].mxu0
    %v904 = vadd.f32 %v863, %v903
    %v905 = vpop.f32.mrb[0].mxu0
    %v906 = vadd.f32 %v865, %v905
    %v907 = vpop.f32.mrb[0].mxu0
    %v908 = vpop.f32.mrb[0].mxu0
    %909 = vdwg.mxu0
    %v910 = vld [vmem:[%s7] sm:$0x3]
    %v911 = vld [vmem:[%s8] sm:$0x3]
    %v912 = vadd.f32 %v904, %v906
    %913 = vadd.xlane.f32.xlu0 %v912
    %v914 = vpop.xlane.xlu0 %913
    %v915 = vrcp.pop 256.0
    %v916 = vmul.f32 %v914, %v915
    %v917 = vmul.f32 %v904, %v904
    %v918 = vmul.f32 %v906, %v906
    %v919 = vadd.f32 %v917, %v918
    %920 = vadd.xlane.f32.xlu0 %v919
    %v921 = vpop.xlane.xlu0 %920
    %v922 = vmul.f32 %v921, %v915
    %v923 = vmul.f32 %v916, %v916
    %v924 = vsub.f32 %v922, %v923
    %v925 = vmax.f32 %v924, 0.0
    %v926 = vadd.f32 %v925, 1e-05
    %v927 = vrsqrt.pop %v926
    %v928 = vpack.c.bf16 %v904, %v904
    %v929 = vpack.c.bf16 %v906, %v906
    %v930 = vpack.c.bf16 %v916, %v916
    %v931 = vsub.bf16 %v928, %v930
    %v932 = vsub.bf16 %v929, %v930
    %v933 = vpack.c.bf16 %v927, %v927
    %v934 = vmul.bf16 %v931, %v933
    %v935 = vmul.bf16 %v932, %v933
    %v937 = vlaneseq
    %v938 = vshrl.u32 %v937, 7
    %v939 = vsub.s32 0, %v938
    %v940 = vrot.slane %v910, %v939
    %v941 = vlaneseq
    %v942 = vshrl.u32 %v941, 7
    %v943 = vsub.s32 1, %v942
    %v944 = vrot.slane %v910, %v943
    %v947 = vpack.c.bf16 %v940, %v940
    %v948 = vpack.c.bf16 %v944, %v944
    %v950 = vpack.i.b16 %v947, %v947
    %v952 = vlaneseq
    %v953 = vshrl.u32 %v952, 7
    %v954 = vsub.s32 0, %v953
    %v955 = vrot.slane %v950, %v954
    %v957 = vpack.i.b16 %v948, %v948
    %v959 = vlaneseq
    %v960 = vshrl.u32 %v959, 7
    %v961 = vsub.s32 0, %v960
    %v962 = vrot.slane %v957, %v961
    %v963 = vmul.bf16 %v934, %v955
    %v964 = vmul.bf16 %v935, %v962
    %v966 = vlaneseq
    %v967 = vshrl.u32 %v966, 7
    %v968 = vsub.s32 0, %v967
    %v969 = vrot.slane %v911, %v968
    %v970 = vlaneseq
    %v971 = vshrl.u32 %v970, 7
    %v972 = vsub.s32 1, %v971
    %v973 = vrot.slane %v911, %v972
    %v976 = vpack.c.bf16 %v969, %v969
    %v977 = vpack.c.bf16 %v973, %v973
    %v979 = vpack.i.b16 %v976, %v976
    %v981 = vlaneseq
    %v982 = vshrl.u32 %v981, 7
    %v983 = vsub.s32 0, %v982
    %v984 = vrot.slane %v979, %v983
    %v986 = vpack.i.b16 %v977, %v977
    %v988 = vlaneseq
    %v989 = vshrl.u32 %v988, 7
    %v990 = vsub.s32 0, %v989
    %v991 = vrot.slane %v986, %v990
    %v992 = vadd.bf16 %v963, %v984
    %v993 = vadd.bf16 %v964, %v991
    %v994 = vmax.bf16 %v992, 0
    %v995 = vmax.bf16 %v993, 0
    %v996 = vld [vmem:[#allocation8] sm:$0xf]
    %v997 = vld [vmem:[#allocation8 + $0x4] sm:$0xf]
    %v998 = vld [vmem:[#allocation8 + $0x8] sm:$0xf]
    %v999 = vld [vmem:[#allocation8 + $0xc] sm:$0xf]
    %v1000 = vld [vmem:[#allocation8 + $0x10] sm:$0xf]
    %v1001 = vld [vmem:[#allocation8 + $0x14] sm:$0xf]
    %v1002 = vld [vmem:[#allocation8 + $0x18] sm:$0xf]
    %v1003 = vld [vmem:[#allocation8 + $0x1c] sm:$0xf]
    %v1004 = vld [vmem:[#allocation8 + $0x20] sm:$0xf]
    %v1005 = vld [vmem:[#allocation8 + $0x24] sm:$0xf]
    %v1006 = vld [vmem:[#allocation8 + $0x28] sm:$0xf]
    %v1007 = vld [vmem:[#allocation8 + $0x2c] sm:$0xf]
    %v1008 = vld [vmem:[#allocation8 + $0x30] sm:$0xf]
    %v1009 = vld [vmem:[#allocation8 + $0x34] sm:$0xf]
    %v1010 = vld [vmem:[#allocation8 + $0x38] sm:$0xf]
    %v1011 = vld [vmem:[#allocation8 + $0x3c] sm:$0xf]
    %v1012 = vld [vmem:[#allocation8 + $0x40] sm:$0xf]
    %v1013 = vld [vmem:[#allocation8 + $0x44] sm:$0xf]
    %v1014 = vld [vmem:[#allocation8 + $0x48] sm:$0xf]
    %v1015 = vld [vmem:[#allocation8 + $0x4c] sm:$0xf]
    %v1016 = vld [vmem:[#allocation8 + $0x50] sm:$0xf]
    %v1017 = vld [vmem:[#allocation8 + $0x54] sm:$0xf]
    %v1018 = vld [vmem:[#allocation8 + $0x58] sm:$0xf]
    %v1019 = vld [vmem:[#allocation8 + $0x5c] sm:$0xf]
    %v1020 = vld [vmem:[#allocation8 + $0x60] sm:$0xf]
    %v1021 = vld [vmem:[#allocation8 + $0x64] sm:$0xf]
    %v1022 = vld [vmem:[#allocation8 + $0x68] sm:$0xf]
    %v1023 = vld [vmem:[#allocation8 + $0x6c] sm:$0xf]
    %v1024 = vld [vmem:[#allocation8 + $0x70] sm:$0xf]
    %v1025 = vld [vmem:[#allocation8 + $0x74] sm:$0xf]
    %v1026 = vld [vmem:[#allocation8 + $0x78] sm:$0xf]
    %v1027 = vld [vmem:[#allocation8 + $0x7c] sm:$0xf]
    %v1028 = vld [vmem:[%s10] sm:$0x1]
    %v1030 = vlaneseq
    %v1031 = vshrl.u32 %v1030, 7
    %v1032 = vsub.s32 0, %v1031
    %v1033 = vrot.slane %v1028, %v1032
    %v1067 = vunpack.c.l.b16 %v996
    %v1068 = vunpack.c.l.b16 %v997
    %v1069 = vunpack.c.l.b16 %v998
    %v1070 = vunpack.c.l.b16 %v999
    %v1071 = vunpack.c.l.b16 %v1000
    %v1072 = vunpack.c.l.b16 %v1001
    %v1073 = vunpack.c.l.b16 %v1002
    %v1074 = vunpack.c.l.b16 %v1003
    %v1075 = vunpack.c.l.b16 %v1004
    %v1076 = vunpack.c.l.b16 %v1005
    %v1077 = vunpack.c.l.b16 %v1006
    %v1078 = vunpack.c.l.b16 %v1007
    %v1079 = vunpack.c.l.b16 %v1008
    %v1080 = vunpack.c.l.b16 %v1009
    %v1081 = vunpack.c.l.b16 %v1010
    %v1082 = vunpack.c.l.b16 %v1011
    %v1083 = vunpack.c.l.b16 %v1012
    %v1084 = vunpack.c.l.b16 %v1013
    %v1085 = vunpack.c.l.b16 %v1014
    %v1086 = vunpack.c.l.b16 %v1015
    %v1087 = vunpack.c.l.b16 %v1016
    %v1088 = vunpack.c.l.b16 %v1017
    %v1089 = vunpack.c.l.b16 %v1018
    %v1090 = vunpack.c.l.b16 %v1019
    %v1091 = vunpack.c.l.b16 %v1020
    %v1092 = vunpack.c.l.b16 %v1021
    %v1093 = vunpack.c.l.b16 %v1022
    %v1094 = vunpack.c.l.b16 %v1023
    %v1095 = vunpack.c.l.b16 %v1024
    %v1096 = vunpack.c.l.b16 %v1025
    %v1097 = vunpack.c.l.b16 %v1026
    %v1098 = vunpack.c.l.b16 %v1027
    %v1099 = vpack.c.b16 %v1068, %v1067
    %v1100 = vpack.c.b16 %v1070, %v1069
    %v1101 = vpack.c.b16 %v1072, %v1071
    %v1102 = vpack.c.b16 %v1074, %v1073
    %v1103 = vpack.c.b16 %v1076, %v1075
    %v1104 = vpack.c.b16 %v1078, %v1077
    %v1105 = vpack.c.b16 %v1080, %v1079
    %v1106 = vpack.c.b16 %v1082, %v1081
    %v1107 = vpack.c.b16 %v1084, %v1083
    %v1108 = vpack.c.b16 %v1086, %v1085
    %v1109 = vpack.c.b16 %v1088, %v1087
    %v1110 = vpack.c.b16 %v1090, %v1089
    %v1111 = vpack.c.b16 %v1092, %v1091
    %v1112 = vpack.c.b16 %v1094, %v1093
    %v1113 = vpack.c.b16 %v1096, %v1095
    %v1114 = vpack.c.b16 %v1098, %v1097
    %1131 = vmatprep.subr.bf16.mxu0 0
    %1132 = vmatpush1.bf16.msra.mxu0 %v1099
    %1133 = vmatprep.subr.bf16.mxu0 0
    %1134 = vmatpush1.bf16.msra.mxu0 %v1100
    %1135 = vmatprep.subr.bf16.mxu0 0
    %1136 = vmatpush1.bf16.msra.mxu0 %v1101
    %1137 = vmatprep.subr.bf16.mxu0 0
    %1138 = vmatpush1.bf16.msra.mxu0 %v1102
    %1139 = vmatprep.subr.bf16.mxu0 0
    %1140 = vmatpush1.bf16.msra.mxu0 %v1103
    %1141 = vmatprep.subr.bf16.mxu0 0
    %1142 = vmatpush1.bf16.msra.mxu0 %v1104
    %1143 = vmatprep.subr.bf16.mxu0 0
    %1144 = vmatpush1.bf16.msra.mxu0 %v1105
    %1145 = vmatprep.subr.bf16.mxu0 0
    %1146 = vmatpush1.bf16.msra.mxu0 %v1106
    %1147 = vmatprep.subr.bf16.mxu0 0
    %1148 = vmatpush1.bf16.msra.mxu0 %v1107
    %1149 = vmatprep.subr.bf16.mxu0 0
    %1150 = vmatpush1.bf16.msra.mxu0 %v1108
    %1151 = vmatprep.subr.bf16.mxu0 0
    %1152 = vmatpush1.bf16.msra.mxu0 %v1109
    %1153 = vmatprep.subr.bf16.mxu0 0
    %1154 = vmatpush1.bf16.msra.mxu0 %v1110
    %1155 = vmatprep.subr.bf16.mxu0 0
    %1156 = vmatpush1.bf16.msra.mxu0 %v1111
    %1157 = vmatprep.subr.bf16.mxu0 0
    %1158 = vmatpush1.bf16.msra.mxu0 %v1112
    %1159 = vmatprep.subr.bf16.mxu0 0
    %1160 = vmatpush1.bf16.msra.mxu0 %v1113
    %1161 = vmatprep.subr.bf16.mxu0 0
    %1162 = vmatpush1.bf16.msra.mxu0 %v1114
    %1163 = vmatprep.mubr.bf16.mxu0 %v995
    %1164 = vmatmul.mubr.bf16.gmra.mrb[0].mxu0 %v994
    %v1165 = vpop.f32.mrb[0].mxu0
    %v1166 = vadd.f32 %v1033, %v1165
    %v1167 = vpop.f32.mrb[0].mxu0
    %v1168 = vpop.f32.mrb[0].mxu0
    %v1169 = vpop.f32.mrb[0].mxu0
    %1170 = vdwg.mxu0
    %v1171 = vld [vmem:[%s11] sm:$0x1]
    %v1172 = vld [vmem:[%s12] sm:$0x1]
    %1173 = vadd.xlane.f32.xlu0 %v1166
    %v1174 = vpop.xlane.xlu0 %1173
    %v1175 = vrcp.pop 128.0
    %v1176 = vmul.f32 %v1174, %v1175
    %v1177 = vmul.f32 %v1166, %v1166
    %1178 = vadd.xlane.f32.xlu0 %v1177
    %v1179 = vpop.xlane.xlu0 %1178
    %v1180 = vmul.f32 %v1179, %v1175
    %v1181 = vmul.f32 %v1176, %v1176
    %v1182 = vsub.f32 %v1180, %v1181
    %v1183 = vmax.f32 %v1182, 0.0
    %v1184 = vadd.f32 %v1183, 1e-05
    %v1185 = vrsqrt.pop %v1184
    %v1186 = vpack.c.bf16 %v1166, %v1166
    %v1187 = vpack.c.bf16 %v1176, %v1176
    %v1188 = vsub.bf16 %v1186, %v1187
    %v1189 = vpack.c.bf16 %v1185, %v1185
    %v1190 = vmul.bf16 %v1188, %v1189
    %v1191 = vpack.c.bf16 %v1171, %v1171
    %v1193 = vpack.i.b16 %v1191, %v1191
    %v1195 = vlaneseq
    %v1196 = vshrl.u32 %v1195, 7
    %v1197 = vsub.s32 0, %v1196
    %v1198 = vrot.slane %v1193, %v1197
    %v1199 = vmul.bf16 %v1190, %v1198
    %v1200 = vpack.c.bf16 %v1172, %v1172
    %v1202 = vpack.i.b16 %v1200, %v1200
    %v1204 = vlaneseq
    %v1205 = vshrl.u32 %v1204, 7
    %v1206 = vsub.s32 0, %v1205
    %v1207 = vrot.slane %v1202, %v1206
    %v1208 = vadd.bf16 %v1199, %v1207
    %v1209 = vmax.bf16 %v1208, 0
    %v1210 = vld [vmem:[#allocation10] sm:$0xf]
    %v1211 = vld [vmem:[#allocation10 + $0x4] sm:$0xf]
    %v1212 = vld [vmem:[#allocation10 + $0x8] sm:$0xf]
    %v1213 = vld [vmem:[#allocation10 + $0xc] sm:$0xf]
    %v1214 = vld [vmem:[#allocation10 + $0x10] sm:$0xf]
    %v1215 = vld [vmem:[#allocation10 + $0x14] sm:$0xf]
    %v1216 = vld [vmem:[#allocation10 + $0x18] sm:$0xf]
    %v1217 = vld [vmem:[#allocation10 + $0x1c] sm:$0xf]
    %v1218 = vld [vmem:[#allocation10 + $0x20] sm:$0xf]
    %v1219 = vld [vmem:[#allocation10 + $0x24] sm:$0xf]
    %v1220 = vld [vmem:[#allocation10 + $0x28] sm:$0xf]
    %v1221 = vld [vmem:[#allocation10 + $0x2c] sm:$0xf]
    %v1222 = vld [vmem:[#allocation10 + $0x30] sm:$0xf]
    %v1223 = vld [vmem:[#allocation10 + $0x34] sm:$0xf]
    %v1224 = vld [vmem:[#allocation10 + $0x38] sm:$0xf]
    %v1225 = vld [vmem:[#allocation10 + $0x3c] sm:$0xf]
    %v1226 = vld [vmem:[%s14] sm:$0x1]
    %v1228 = vlaneseq
    %v1229 = vshrl.u32 %v1228, 7
    %v1230 = vsub.s32 0, %v1229
    %v1231 = vrot.slane %v1226, %v1230
    %v1249 = vunpack.c.l.b16 %v1210
    %v1250 = vunpack.c.l.b16 %v1211
    %v1251 = vunpack.c.l.b16 %v1212
    %v1252 = vunpack.c.l.b16 %v1213
    %v1253 = vunpack.c.l.b16 %v1214
    %v1254 = vunpack.c.l.b16 %v1215
    %v1255 = vunpack.c.l.b16 %v1216
    %v1256 = vunpack.c.l.b16 %v1217
    %v1257 = vunpack.c.l.b16 %v1218
    %v1258 = vunpack.c.l.b16 %v1219
    %v1259 = vunpack.c.l.b16 %v1220
    %v1260 = vunpack.c.l.b16 %v1221
    %v1261 = vunpack.c.l.b16 %v1222
    %v1262 = vunpack.c.l.b16 %v1223
    %v1263 = vunpack.c.l.b16 %v1224
    %v1264 = vunpack.c.l.b16 %v1225
    %v1265 = vpack.c.b16 %v1250, %v1249
    %v1266 = vpack.c.b16 %v1252, %v1251
    %v1267 = vpack.c.b16 %v1254, %v1253
    %v1268 = vpack.c.b16 %v1256, %v1255
    %v1269 = vpack.c.b16 %v1258, %v1257
    %v1270 = vpack.c.b16 %v1260, %v1259
    %v1271 = vpack.c.b16 %v1262, %v1261
    %v1272 = vpack.c.b16 %v1264, %v1263
    %1281 = vmatprep.subr.bf16.mxu0 0
    %1282 = vmatpush1.bf16.msra.mxu0 %v1265
    %1283 = vmatprep.subr.bf16.mxu0 0
    %1284 = vmatpush1.bf16.msra.mxu0 %v1266
    %1285 = vmatprep.subr.bf16.mxu0 0
    %1286 = vmatpush1.bf16.msra.mxu0 %v1267
    %1287 = vmatprep.subr.bf16.mxu0 0
    %1288 = vmatpush1.bf16.msra.mxu0 %v1268
    %1289 = vmatprep.subr.bf16.mxu0 0
    %1290 = vmatpush1.bf16.msra.mxu0 %v1269
    %1291 = vmatprep.subr.bf16.mxu0 0
    %1292 = vmatpush1.bf16.msra.mxu0 %v1270
    %1293 = vmatprep.subr.bf16.mxu0 0
    %1294 = vmatpush1.bf16.msra.mxu0 %v1271
    %1295 = vmatprep.subr.bf16.mxu0 0
    %1296 = vmatpush1.bf16.msra.mxu0 %v1272
    %1297 = vmatprep.subr.bf16.mxu0 0
    %1298 = vmatpush1.bf16.msra.mxu0 0
    %1299 = vmatprep.subr.bf16.mxu0 0
    %1300 = vmatpush1.bf16.msra.mxu0 0
    %1301 = vmatprep.subr.bf16.mxu0 0
    %1302 = vmatpush1.bf16.msra.mxu0 0
    %1303 = vmatprep.subr.bf16.mxu0 0
    %1304 = vmatpush1.bf16.msra.mxu0 0
    %1305 = vmatprep.subr.bf16.mxu0 0
    %1306 = vmatpush1.bf16.msra.mxu0 0
    %1307 = vmatprep.subr.bf16.mxu0 0
    %1308 = vmatpush1.bf16.msra.mxu0 0
    %1309 = vmatprep.subr.bf16.mxu0 0
    %1310 = vmatpush1.bf16.msra.mxu0 0
    %1311 = vmatprep.subr.bf16.mxu0 0
    %1312 = vmatpush1.bf16.msra.mxu0 0
    %1313 = vmatprep.mubr.bf16.mxu0 0
    %1314 = vmatmul.mubr.bf16.gmra.mrb[0].mxu0 %v1209
    %v1315 = vpop.f32.mrb[0].mxu0
    %v1316 = vadd.f32 %v1231, %v1315
    %v1317 = vpop.f32.mrb[0].mxu0
    %v1318 = vpop.f32.mrb[0].mxu0
    %v1319 = vpop.f32.mrb[0].mxu0
    %1320 = vdwg.mxu0
    %v1321 = vpack.c.bf16 %v1316, %v1316
    %1322 = vst [vmem:[#allocation11] sm:$0xf] %v1321
    // Predicated region
    $region82: #{tpu_custom_call.1} parent=1 // pred_check
      _
    $region83: #{tpu_custom_call.1} parent=1 // pred_check_branch
      %1324 = sbr.rel (0) target = $region85
    $region84: #{tpu_custom_call.1} parent=1 // pred_region
      %s1326 = ssub.s32 64, 64
      %1327 = vsyncadd [#allocation4], %s1326
      %s1329 = sshll.u32 [#allocation11], 4
      %s1330 = int_to_ptr.vmem [resolvable:$true] %s1329
      %1332 = dma.vmem_to_hbm [thread:$0]  %s1330, 64, %s15, [#allocation4]
    $region85: #{tpu_custom_call.1} parent=1 // pred_fallthru
      _
    // Predicated region
    $region86: #{tpu_custom_call.1} parent=1 // pred_check
      _
    $region87: #{tpu_custom_call.1} parent=1 // pred_check_branch
      %1334 = sbr.rel (0) target = $region89
    $region88: #{tpu_custom_call.1} parent=1 // pred_region
      %1335 = dma.done [#allocation4], 64
    $region89: #{tpu_custom_call.1} parent=1 // pred_fallthru
      _
    %1336 = vsyncpa [#allocation3], 1
    %1337 = vsyncpa [#allocation6], 1
    %1338 = vsyncpa [#allocation9], 1
    %1339 = vsyncpa [#allocation4], 1

</llo_original>
